<compile_context>
chip_gen: v5e
topology: v5e:2x2
jax: 0.10.0
libtpu: 0.0.40
codegen_flags: <defaults>
</compile_context>

<pallas_src>
import math
from functools import partial

import jax
import jax.numpy as jnp
from jax.experimental import pallas as pl
from jax.experimental.pallas import tpu as pltpu


def _fused_kernel(mask_ref, relw_ref, adj_ref, ytgt_ref,
                  w_out_ref, loss_ref, acc_ref,
                  *, n_nodes, n_mask, power, matmul_dtype):
    r = pl.program_id(0)
    num_r = pl.num_programs(0)
    Np = acc_ref.shape[0]
    Mp = mask_ref.shape[0]
    N = n_nodes

    # ---- relation-weight shift: w_r = emb[r] + min_r emb[r] (SMEM scalars) --
    n_rel = relw_ref.shape[0]
    w_min = relw_ref[0]
    for i in range(1, n_rel):
        w_min = jnp.minimum(w_min, relw_ref[i])
    w_r = relw_ref[r] + w_min

    # ---- phase 1: weighted relation sum, accumulated across the R grid ----
    @pl.when(r == 0)
    def _():
        acc_ref[...] = jnp.zeros_like(acc_ref)     # padded region stays zero

    acc_ref[0:N, 0:N] += w_r * adj_ref[...]        # unpadded (N, N) axpy

    # ---- phase 2 (last relation): Horner series + gather + cross entropy ----
    @pl.when(r == num_r - 1)
    def _():
        a = acc_ref[...]                            # (Np, Np) f32, zero-padded
        a_mm = a.astype(matmul_dtype)

        row_ids = jax.lax.broadcasted_iota(jnp.int32, (Np, Np), 0)
        col_ids = jax.lax.broadcasted_iota(jnp.int32, (Np, Np), 1)
        diag = row_ids == col_ids                   # hoisted, reused each step

        if power >= 2:
            # C = A + A^2/2! + ... + A^p/p! = A (I + A/2 (I + A/3 (... (I + A/p))))
            h = jnp.where(diag, (1.0 / power) * a + 1.0, (1.0 / power) * a)
            for i in range(power - 1, 1, -1):       # p-2 chained matmuls
                ah = jnp.dot(a_mm, h.astype(matmul_dtype),
                             preferred_element_type=jnp.float32)
                h = jnp.where(diag, (1.0 / i) * ah + 1.0, (1.0 / i) * ah)
            res = jnp.dot(a_mm, h.astype(matmul_dtype),
                          preferred_element_type=jnp.float32)
        else:
            res = a
        w_out_ref[...] = res                        # lane-dense (Np, Np) store

        # ---- masked-row gather: one vector compare + one f32 MXU matmul ----
        row_m = jax.lax.broadcasted_iota(jnp.int32, (Mp, Np), 0)
        col_m = jax.lax.broadcasted_iota(jnp.int32, (Mp, Np), 1)
        onehot = (col_m == mask_ref[...]).astype(jnp.float32)   # pad idx = -1 -> zero row
        pred = jnp.dot(onehot, res, preferred_element_type=jnp.float32)  # (Mp, Np)

        # ---- soft-target cross entropy, masking padded rows / columns ----
        valid = (col_m < n_nodes) & (row_m < n_mask)
        neg = jnp.float32(-1e30)
        y_m = jnp.where(valid, ytgt_ref[...], neg)
        p_m = jnp.where(valid, pred, neg)

        # softmax(target rows) -- exact division (tiny tile, not on crit path)
        y_shift = y_m - jnp.max(y_m, axis=-1, keepdims=True)
        y_exp = jnp.exp(y_shift)
        y_sm = y_exp / jnp.sum(y_exp, axis=-1, keepdims=True)

        # log_softmax(pred rows)
        p_shift = p_m - jnp.max(p_m, axis=-1, keepdims=True)
        lse = jnp.log(jnp.sum(jnp.exp(p_shift), axis=-1, keepdims=True))
        log_sm = p_shift - lse

        prod = jnp.where(valid, y_sm * log_sm, 0.0)
        loss_ref[0, 0] = -jnp.sum(prod) * (1.0 / n_mask)   # mean over REAL rows


def _physical_vmem_bytes():
    """Per-core VMEM capacity; conservative 64 MiB (v7x) fallback."""
    try:
        info = pltpu.get_tpu_info()
        for attr in ("vmem_capacity_bytes", "vmem_size_bytes", "vmem_bytes"):
            v = getattr(info, attr, None)
            if v:
                return int(v)
    except Exception:
        pass
    return 64 << 20


def fit_influence_forward(adj, target, mask_idx, rel_emb, power=8,
                          matmul_dtype=jnp.bfloat16):
    """Fused Pallas forward. Returns (loss, communicability matrix (N, N))."""
    R, N, _ = adj.shape
    M = mask_idx.shape[0]
    LANE, SUB = 128, 8
    Np = max(LANE, ((N + LANE - 1) // LANE) * LANE)   # lane-dense node dim
    Mp = max(SUB, ((M + SUB - 1) // SUB) * SUB)       # sublane-padded mask rows

    rel_w = rel_emb.reshape(-1).astype(jnp.float32)   # flat (R,) -> SMEM

    # Only the M masked target rows ever reach VMEM (the full (N, N) target is
    # never DMA'd).  Zero-padding is exact; the CE masks padded rows/cols.
    y_rows = jnp.zeros((Mp, Np), jnp.float32).at[:M, :N].set(
        target[mask_idx].astype(jnp.float32))
    mask_pad = jnp.full((Mp, 1), -1, jnp.int32).at[:M, 0].set(
        mask_idx.astype(jnp.int32))

    kernel = partial(_fused_kernel, n_nodes=N, n_mask=M, power=power,
                     matmul_dtype=matmul_dtype)

    # VMEM budget: acc + output + Horner temporaries (f32) + bf16 operand
    # copies + double-buffered (N, N) adj block + epilogue tiles + slack.
    vmem_need = (4 * Np * Np * 6
                 + 2 * Np * Np * 2
                 + 4 * N * N * 2
                 + 4 * Mp * Np * 4
                 + (1 << 20))
    cap = _physical_vmem_bytes() - (8 << 20)          # headroom for Mosaic scratch
    vmem_limit = int(min(max(vmem_need, 32 << 20), cap))

    grid_spec = pltpu.PrefetchScalarGridSpec(
        num_scalar_prefetch=0,
        grid=(R,),
        in_specs=[
            pl.BlockSpec(memory_space=pltpu.MemorySpace.VMEM),   # mask (Mp, 1) i32
            pl.BlockSpec(memory_space=pltpu.MemorySpace.SMEM),   # rel_w (R,)
            pl.BlockSpec((None, N, N), lambda r: (r, 0, 0)),     # adj[r] (N, N)
            pl.BlockSpec(memory_space=pltpu.MemorySpace.VMEM),   # target rows (Mp, Np)
        ],
        out_specs=(
            pl.BlockSpec((Np, Np), lambda r: (0, 0)),            # communicability
            pl.BlockSpec(memory_space=pltpu.MemorySpace.SMEM),   # scalar loss
        ),
        scratch_shapes=[pltpu.VMEM((Np, Np), jnp.float32)],      # weighted-sum acc
    )

    w_full, loss = pl.pallas_call(
        kernel,
        out_shape=(jax.ShapeDtypeStruct((Np, Np), jnp.float32),
                   jax.ShapeDtypeStruct((1, 1), jnp.float32)),
        grid_spec=grid_spec,
        compiler_params=pltpu.CompilerParams(
            dimension_semantics=("arbitrary",),      # R axis carries the accumulator
            vmem_limit_bytes=vmem_limit),
    )(mask_pad, rel_w, adj.astype(jnp.float32), y_rows)

    return loss[0, 0], w_full[:N, :N]


# --------------------------- pure-JAX reference ----------------------------
def _reference(adj, target, mask_idx, rel_emb, power):
    rel_w = rel_emb.reshape(-1)
    rel_w = rel_w + jnp.min(rel_w)
    w = jnp.sum(adj * rel_w[:, None, None], axis=0)
    gp = w
    res = w
    for i in range(2, power + 1):
        gp = gp @ w
        res = res + gp / math.factorial(i)
    pred = res[mask_idx]
    y = target[mask_idx]
    y_sm = jax.nn.softmax(y, axis=-1)
    log_sm = jax.nn.log_softmax(pred, axis=-1)
    loss = jnp.mean(-jnp.sum(y_sm * log_sm, axis=-1))
    return loss, res


if __name__ == "__main__":
    R, N, M, POWER = 4, 16, 4, 8            # num_relations, nodes, masked rows

    key = jax.random.PRNGKey(0)
    k1, k2, k3 = jax.random.split(key, 3)

    # sparse-ish weighted adjacency per relation, kept small so A^8 stays tame
    mask = (jax.random.uniform(k1, (R, N, N)) < 0.4).astype(jnp.float32)
    adj = 0.1 * jax.random.uniform(k2, (R, N, N), dtype=jnp.float32) * mask
    target = jax.random.normal(k3, (N, N), dtype=jnp.float32)
    mask_idx = jnp.array([1, 3, 7, 11], dtype=jnp.int32)

    # nn.Embedding(num_relations, 1) with constant init = 1.0
    rel_emb = jnp.ones((R, 1), dtype=jnp.float32)

    ref_loss, ref_w = _reference(adj, target, mask_idx, rel_emb, POWER)

    # default path: bf16 matmul operands, f32 accumulation (~2x MXU v6e/v7x)
    loss_bf, w_bf = fit_influence_forward(adj, target, mask_idx, rel_emb, power=POWER)
    jax.block_until_ready((loss_bf, w_bf))
    assert jnp.allclose(w_bf, ref_w, rtol=5e-2, atol=5e-2), "communicability mismatch (bf16)"
    assert jnp.allclose(loss_bf, ref_loss, rtol=5e-2, atol=5e-2), "loss mismatch (bf16)"

    # full-f32 path for tight numerical fidelity
    loss_f32, w_f32 = fit_influence_forward(adj, target, mask_idx, rel_emb,
                                            power=POWER, matmul_dtype=jnp.float32)
    jax.block_until_ready((loss_f32, w_f32))
    assert jnp.allclose(w_f32, ref_w, rtol=1e-4, atol=1e-4), "communicability mismatch (f32)"
    assert jnp.allclose(loss_f32, ref_loss, rtol=2e-3, atol=2e-3), "loss mismatch (f32)"

    print("KERNEL_OK")
</pallas_src>

<mosaic_0001>
module attributes {stable_mosaic.version = 11 : i64} {
  func.func @_fused_kernel(%arg0: i32, %arg1: memref<8x1xi32, #tpu.memory_space<vmem>>, %arg2: memref<4xf32, #tpu.memory_space<smem>>, %arg3: memref<1x16x16xf32, #tpu.memory_space<vmem>>, %arg4: memref<8x128xf32, #tpu.memory_space<vmem>>, %arg5: memref<128x128xf32, #tpu.memory_space<vmem>>, %arg6: memref<1x1xf32, #tpu.memory_space<smem>>, %arg7: memref<128x128xf32, #tpu.memory_space<vmem>>) attributes {dimension_semantics = [#tpu.dimension_semantics<arbitrary>], iteration_bounds = array<i64: 4>, scalar_prefetch = 0 : i64, scratch_operands = 1 : i64, tpu.core_type = #tpu.core_type<tc>, window_params = [{pipeline_mode = #tpu.pipeline_mode<synchronous>, transform_indices = @transform_0, window_bounds = array<i64: 8, 1>}, {transform_indices = @transform_1, window_bounds = array<i64: 4>}, {transform_indices = @transform_2, window_bounds = array<i64: 1, 16, 16>}, {pipeline_mode = #tpu.pipeline_mode<synchronous>, transform_indices = @transform_3, window_bounds = array<i64: 8, 128>}, {pipeline_mode = #tpu.pipeline_mode<synchronous>, transform_indices = @transform_4, window_bounds = array<i64: 128, 128>}, {transform_indices = @transform_5, window_bounds = array<i64: 1, 1>}]} {
    %c0 = arith.constant 0 : index
    %0 = memref.load %arg2[%c0] : memref<4xf32, #tpu.memory_space<smem>>
    %c1 = arith.constant 1 : index
    %1 = memref.load %arg2[%c1] : memref<4xf32, #tpu.memory_space<smem>>
    %2 = arith.minimumf %0, %1 : f32
    %c2 = arith.constant 2 : index
    %3 = memref.load %arg2[%c2] : memref<4xf32, #tpu.memory_space<smem>>
    %4 = arith.minimumf %2, %3 : f32
    %c3 = arith.constant 3 : index
    %5 = memref.load %arg2[%c3] : memref<4xf32, #tpu.memory_space<smem>>
    %6 = arith.minimumf %4, %5 : f32
    %7 = arith.index_cast %arg0 : i32 to index
    %8 = memref.load %arg2[%7] : memref<4xf32, #tpu.memory_space<smem>>
    %9 = arith.addf %8, %6 : f32
    %c0_i32 = arith.constant 0 : i32
    %10 = arith.cmpi eq, %arg0, %c0_i32 : i32
    %11 = arith.extui %10 : i1 to i32
    %c0_i32_0 = arith.constant 0 : i32
    %12 = arith.cmpi ne, %11, %c0_i32_0 : i32
    scf.if %12 {
      %cst = arith.constant 0.000000e+00 : f32
      %23 = vector.broadcast %cst : f32 to vector<128x128xf32>
      %c0_9 = arith.constant 0 : index
      %c0_10 = arith.constant 0 : index
      %24 = vector.load %arg7[%c0_9, %c0_10] : memref<128x128xf32, #tpu.memory_space<vmem>>, vector<128x128xf32>
      tpu.vector_store %arg7[%c0_9, %c0_10], %23 {strides = array<i32>} : memref<128x128xf32, #tpu.memory_space<vmem>>, vector<128x128xf32>,
    } else {
    }
    %c0_1 = arith.constant 0 : index
    %c0_2 = arith.constant 0 : index
    %13 = vector.load %arg7[%c0_1, %c0_2] : memref<128x128xf32, #tpu.memory_space<vmem>>, vector<16x16xf32>
    %c0_3 = arith.constant 0 : index
    %c0_4 = arith.constant 0 : index
    %c0_5 = arith.constant 0 : index
    %14 = vector.load %arg3[%c0_3, %c0_4, %c0_5] : memref<1x16x16xf32, #tpu.memory_space<vmem>>, vector<1x16x16xf32>
    %15 = vector.shape_cast %14 : vector<1x16x16xf32> to vector<16x16xf32>
    %16 = vector.broadcast %9 : f32 to vector<16x16xf32>
    %17 = arith.mulf %16, %15 : vector<16x16xf32>
    %18 = arith.addf %13, %17 : vector<16x16xf32>
    %c0_6 = arith.constant 0 : index
    %c0_7 = arith.constant 0 : index
    %19 = vector.load %arg7[%c0_6, %c0_7] : memref<128x128xf32, #tpu.memory_space<vmem>>, vector<16x16xf32>
    tpu.vector_store %arg7[%c0_6, %c0_7], %18 {strides = array<i32>} : memref<128x128xf32, #tpu.memory_space<vmem>>, vector<16x16xf32>,
    %c3_i32 = arith.constant 3 : i32
    %20 = arith.cmpi eq, %arg0, %c3_i32 : i32
    %21 = arith.extui %20 : i1 to i32
    %c0_i32_8 = arith.constant 0 : i32
    %22 = arith.cmpi ne, %21, %c0_i32_8 : i32
    scf.if %22 {
      %c0_9 = arith.constant 0 : index
      %c0_10 = arith.constant 0 : index
      %23 = vector.load %arg7[%c0_9, %c0_10] : memref<128x128xf32, #tpu.memory_space<vmem>>, vector<128x128xf32>
      %24 = arith.truncf %23 : vector<128x128xf32> to vector<128x128xbf16>
      %25 = tpu.iota {dimensions = array<i32: 0>} : vector<128x128xi32>
      %26 = tpu.iota {dimensions = array<i32: 1>} : vector<128x128xi32>
      %27 = arith.cmpi eq, %25, %26 : vector<128x128xi32>
      %cst = arith.constant 1.250000e-01 : f32
      %28 = vector.broadcast %cst : f32 to vector<128x128xf32>
      %29 = arith.mulf %28, %23 : vector<128x128xf32>
      %cst_11 = arith.constant 1.000000e+00 : f32
      %30 = vector.broadcast %cst_11 : f32 to vector<128x128xf32>
      %31 = arith.addf %29, %30 : vector<128x128xf32>
      %cst_12 = arith.constant 1.250000e-01 : f32
      %32 = vector.broadcast %cst_12 : f32 to vector<128x128xf32>
      %33 = arith.mulf %32, %23 : vector<128x128xf32>
      %34 = arith.select %27, %31, %33 : vector<128x128xi1>, vector<128x128xf32>
      %35 = arith.truncf %34 : vector<128x128xf32> to vector<128x128xbf16>
      %cst_13 = arith.constant dense<0.000000e+00> : vector<128x128xf32>
      %36 = tpu.matmul %24, %35, %cst_13 {dimension_numbers = #tpu.dot_dimension_numbers<[1], [0], [0], [1], [0, 0, 1, 1], [], []>} : vector<128x128xbf16>, vector<128x128xbf16>, vector<128x128xf32> -> vector<128x128xf32>
      %cst_14 = arith.constant 0.142857149 : f32
      %37 = vector.broadcast %cst_14 : f32 to vector<128x128xf32>
      %38 = arith.mulf %37, %36 : vector<128x128xf32>
      %cst_15 = arith.constant 1.000000e+00 : f32
      %39 = vector.broadcast %cst_15 : f32 to vector<128x128xf32>
      %40 = arith.addf %38, %39 : vector<128x128xf32>
      %cst_16 = arith.constant 0.142857149 : f32
      %41 = vector.broadcast %cst_16 : f32 to vector<128x128xf32>
      %42 = arith.mulf %41, %36 : vector<128x128xf32>
      %43 = arith.select %27, %40, %42 : vector<128x128xi1>, vector<128x128xf32>
      %44 = arith.truncf %43 : vector<128x128xf32> to vector<128x128xbf16>
      %cst_17 = arith.constant dense<0.000000e+00> : vector<128x128xf32>
      %45 = tpu.matmul %24, %44, %cst_17 {dimension_numbers = #tpu.dot_dimension_numbers<[1], [0], [0], [1], [0, 0, 1, 1], [], []>} : vector<128x128xbf16>, vector<128x128xbf16>, vector<128x128xf32> -> vector<128x128xf32>
      %cst_18 = arith.constant 0.166666672 : f32
      %46 = vector.broadcast %cst_18 : f32 to vector<128x128xf32>
      %47 = arith.mulf %46, %45 : vector<128x128xf32>
      %cst_19 = arith.constant 1.000000e+00 : f32
      %48 = vector.broadcast %cst_19 : f32 to vector<128x128xf32>
      %49 = arith.addf %47, %48 : vector<128x128xf32>
      %cst_20 = arith.constant 0.166666672 : f32
      %50 = vector.broadcast %cst_20 : f32 to vector<128x128xf32>
      %51 = arith.mulf %50, %45 : vector<128x128xf32>
      %52 = arith.select %27, %49, %51 : vector<128x128xi1>, vector<128x128xf32>
      %53 = arith.truncf %52 : vector<128x128xf32> to vector<128x128xbf16>
      %cst_21 = arith.constant dense<0.000000e+00> : vector<128x128xf32>
      %54 = tpu.matmul %24, %53, %cst_21 {dimension_numbers = #tpu.dot_dimension_numbers<[1], [0], [0], [1], [0, 0, 1, 1], [], []>} : vector<128x128xbf16>, vector<128x128xbf16>, vector<128x128xf32> -> vector<128x128xf32>
      %cst_22 = arith.constant 2.000000e-01 : f32
      %55 = vector.broadcast %cst_22 : f32 to vector<128x128xf32>
      %56 = arith.mulf %55, %54 : vector<128x128xf32>
      %cst_23 = arith.constant 1.000000e+00 : f32
      %57 = vector.broadcast %cst_23 : f32 to vector<128x128xf32>
      %58 = arith.addf %56, %57 : vector<128x128xf32>
      %cst_24 = arith.constant 2.000000e-01 : f32
      %59 = vector.broadcast %cst_24 : f32 to vector<128x128xf32>
      %60 = arith.mulf %59, %54 : vector<128x128xf32>
      %61 = arith.select %27, %58, %60 : vector<128x128xi1>, vector<128x128xf32>
      %62 = arith.truncf %61 : vector<128x128xf32> to vector<128x128xbf16>
      %cst_25 = arith.constant dense<0.000000e+00> : vector<128x128xf32>
      %63 = tpu.matmul %24, %62, %cst_25 {dimension_numbers = #tpu.dot_dimension_numbers<[1], [0], [0], [1], [0, 0, 1, 1], [], []>} : vector<128x128xbf16>, vector<128x128xbf16>, vector<128x128xf32> -> vector<128x128xf32>
      %cst_26 = arith.constant 2.500000e-01 : f32
      %64 = vector.broadcast %cst_26 : f32 to vector<128x128xf32>
      %65 = arith.mulf %64, %63 : vector<128x128xf32>
      %cst_27 = arith.constant 1.000000e+00 : f32
      %66 = vector.broadcast %cst_27 : f32 to vector<128x128xf32>
      %67 = arith.addf %65, %66 : vector<128x128xf32>
      %cst_28 = arith.constant 2.500000e-01 : f32
      %68 = vector.broadcast %cst_28 : f32 to vector<128x128xf32>
      %69 = arith.mulf %68, %63 : vector<128x128xf32>
      %70 = arith.select %27, %67, %69 : vector<128x128xi1>, vector<128x128xf32>
      %71 = arith.truncf %70 : vector<128x128xf32> to vector<128x128xbf16>
      %cst_29 = arith.constant dense<0.000000e+00> : vector<128x128xf32>
      %72 = tpu.matmul %24, %71, %cst_29 {dimension_numbers = #tpu.dot_dimension_numbers<[1], [0], [0], [1], [0, 0, 1, 1], [], []>} : vector<128x128xbf16>, vector<128x128xbf16>, vector<128x128xf32> -> vector<128x128xf32>
      %cst_30 = arith.constant 0.333333343 : f32
      %73 = vector.broadcast %cst_30 : f32 to vector<128x128xf32>
      %74 = arith.mulf %73, %72 : vector<128x128xf32>
      %cst_31 = arith.constant 1.000000e+00 : f32
      %75 = vector.broadcast %cst_31 : f32 to vector<128x128xf32>
      %76 = arith.addf %74, %75 : vector<128x128xf32>
      %cst_32 = arith.constant 0.333333343 : f32
      %77 = vector.broadcast %cst_32 : f32 to vector<128x128xf32>
      %78 = arith.mulf %77, %72 : vector<128x128xf32>
      %79 = arith.select %27, %76, %78 : vector<128x128xi1>, vector<128x128xf32>
      %80 = arith.truncf %79 : vector<128x128xf32> to vector<128x128xbf16>
      %cst_33 = arith.constant dense<0.000000e+00> : vector<128x128xf32>
      %81 = tpu.matmul %24, %80, %cst_33 {dimension_numbers = #tpu.dot_dimension_numbers<[1], [0], [0], [1], [0, 0, 1, 1], [], []>} : vector<128x128xbf16>, vector<128x128xbf16>, vector<128x128xf32> -> vector<128x128xf32>
      %cst_34 = arith.constant 5.000000e-01 : f32
      %82 = vector.broadcast %cst_34 : f32 to vector<128x128xf32>
      %83 = arith.mulf %82, %81 : vector<128x128xf32>
      %cst_35 = arith.constant 1.000000e+00 : f32
      %84 = vector.broadcast %cst_35 : f32 to vector<128x128xf32>
      %85 = arith.addf %83, %84 : vector<128x128xf32>
      %cst_36 = arith.constant 5.000000e-01 : f32
      %86 = vector.broadcast %cst_36 : f32 to vector<128x128xf32>
      %87 = arith.mulf %86, %81 : vector<128x128xf32>
      %88 = arith.select %27, %85, %87 : vector<128x128xi1>, vector<128x128xf32>
      %89 = arith.truncf %88 : vector<128x128xf32> to vector<128x128xbf16>
      %cst_37 = arith.constant dense<0.000000e+00> : vector<128x128xf32>
      %90 = tpu.matmul %24, %89, %cst_37 {dimension_numbers = #tpu.dot_dimension_numbers<[1], [0], [0], [1], [0, 0, 1, 1], [], []>} : vector<128x128xbf16>, vector<128x128xbf16>, vector<128x128xf32> -> vector<128x128xf32>
      %c0_38 = arith.constant 0 : index
      %c0_39 = arith.constant 0 : index
      %91 = vector.load %arg5[%c0_38, %c0_39] : memref<128x128xf32, #tpu.memory_space<vmem>>, vector<128x128xf32>
      tpu.vector_store %arg5[%c0_38, %c0_39], %90 {strides = array<i32>} : memref<128x128xf32, #tpu.memory_space<vmem>>, vector<128x128xf32>,
      %92 = tpu.iota {dimensions = array<i32: 0>} : vector<8x128xi32>
      %93 = tpu.iota {dimensions = array<i32: 1>} : vector<8x128xi32>
      %c0_40 = arith.constant 0 : index
      %c0_41 = arith.constant 0 : index
      %94 = vector.load %arg1[%c0_40, %c0_41] : memref<8x1xi32, #tpu.memory_space<vmem>>, vector<8x1xi32>
      %95 = vector.broadcast %94 : vector<8x1xi32> to vector<8x128xi32>
      %96 = arith.cmpi eq, %93, %95 : vector<8x128xi32>
      %97 = arith.extui %96 : vector<8x128xi1> to vector<8x128xi32>
      %98 = arith.sitofp %97 : vector<8x128xi32> to vector<8x128xf32>
      %cst_42 = arith.constant dense<0.000000e+00> : vector<8x128xf32>
      %99 = tpu.matmul %98, %90, %cst_42 {dimension_numbers = #tpu.dot_dimension_numbers<[1], [0], [0], [1], [0, 0, 1, 1], [], []>} : vector<8x128xf32>, vector<128x128xf32>, vector<8x128xf32> -> vector<8x128xf32>
      %c16_i32 = arith.constant 16 : i32
      %100 = vector.broadcast %c16_i32 : i32 to vector<8x128xi32>
      %101 = arith.cmpi slt, %93, %100 : vector<8x128xi32>
      %c4_i32 = arith.constant 4 : i32
      %102 = vector.broadcast %c4_i32 : i32 to vector<8x128xi32>
      %103 = arith.cmpi slt, %92, %102 : vector<8x128xi32>
      %104 = arith.andi %101, %103 : vector<8x128xi1>
      %c0_43 = arith.constant 0 : index
      %c0_44 = arith.constant 0 : index
      %105 = vector.load %arg4[%c0_43, %c0_44] : memref<8x128xf32, #tpu.memory_space<vmem>>, vector<8x128xf32>
      %cst_45 = arith.constant -1.000000e+30 : f32
      %106 = vector.broadcast %cst_45 : f32 to vector<8x128xf32>
      %107 = arith.select %104, %105, %106 : vector<8x128xi1>, vector<8x128xf32>
      %cst_46 = arith.constant -1.000000e+30 : f32
      %108 = vector.broadcast %cst_46 : f32 to vector<8x128xf32>
      %109 = arith.select %104, %99, %108 : vector<8x128xi1>, vector<8x128xf32>
      %cst_47 = arith.constant dense<0xFF800000> : vector<8xf32>
      %110 = vector.multi_reduction <maximumf>, %107, %cst_47 [1] : vector<8x128xf32> to vector<8xf32>
      %111 = vector.shape_cast %110 : vector<8xf32> to vector<8x1xf32>
      %112 = vector.broadcast %111 : vector<8x1xf32> to vector<8x128xf32>
      %113 = arith.subf %107, %112 : vector<8x128xf32>
      %114 = math.exp %113 : vector<8x128xf32>
      %cst_48 = arith.constant dense<0.000000e+00> : vector<8xf32>
      %115 = vector.multi_reduction <add>, %114, %cst_48 [1] : vector<8x128xf32> to vector<8xf32>
      %116 = vector.shape_cast %115 : vector<8xf32> to vector<8x1xf32>
      %117 = vector.broadcast %116 : vector<8x1xf32> to vector<8x128xf32>
      %118 = arith.divf %114, %117 : vector<8x128xf32>
      %cst_49 = arith.constant dense<0xFF800000> : vector<8xf32>
      %119 = vector.multi_reduction <maximumf>, %109, %cst_49 [1] : vector<8x128xf32> to vector<8xf32>
      %120 = vector.shape_cast %119 : vector<8xf32> to vector<8x1xf32>
      %121 = vector.broadcast %120 : vector<8x1xf32> to vector<8x128xf32>
      %122 = arith.subf %109, %121 : vector<8x128xf32>
      %123 = math.exp %122 : vector<8x128xf32>
      %cst_50 = arith.constant dense<0.000000e+00> : vector<8xf32>
      %124 = vector.multi_reduction <add>, %123, %cst_50 [1] : vector<8x128xf32> to vector<8xf32>
      %125 = vector.shape_cast %124 : vector<8xf32> to vector<8x1xf32>
      %126 = math.log %125 : vector<8x1xf32>
      %127 = vector.broadcast %126 : vector<8x1xf32> to vector<8x128xf32>
      %128 = arith.subf %122, %127 : vector<8x128xf32>
      %129 = arith.mulf %118, %128 : vector<8x128xf32>
      %cst_51 = arith.constant 0.000000e+00 : f32
      %130 = vector.broadcast %cst_51 : f32 to vector<8x128xf32>
      %131 = arith.select %104, %129, %130 : vector<8x128xi1>, vector<8x128xf32>
      %132 = vector.shape_cast %131 : vector<8x128xf32> to vector<1x8x128xf32>
      %cst_52 = arith.constant dense<0.000000e+00> : vector<1xf32>
      %133 = vector.multi_reduction <add>, %132, %cst_52 [1, 2] : vector<1x8x128xf32> to vector<1xf32>
      %134 = vector.shape_cast %133 : vector<1xf32> to vector<1x1x1xf32>
      %135 = vector.extract %134[0, 0, 0] : f32 from vector<1x1x1xf32>
      %cst_53 = arith.constant 0.000000e+00 : f32
      %136 = arith.subf %cst_53, %135 : f32
      %cst_54 = arith.constant 2.500000e-01 : f32
      %137 = arith.mulf %136, %cst_54 : f32
      %c0_55 = arith.constant 0 : index
      %c0_56 = arith.constant 0 : index
      %138 = memref.load %arg6[%c0_55, %c0_56] : memref<1x1xf32, #tpu.memory_space<smem>>
      memref.store %137, %arg6[%c0_55, %c0_56] : memref<1x1xf32, #tpu.memory_space<smem>>
    } else {
    }
    return
  }
  func.func @transform_0(%arg0: i32) -> (i32, i32) {
    %c0_i32 = arith.constant 0 : i32
    %c0_i32_0 = arith.constant 0 : i32
    %c0_i32_1 = arith.constant 0 : i32
    return %c0_i32, %c0_i32_0 : i32, i32
  }
  func.func @transform_1(%arg0: i32) -> i32 {
    %c0_i32 = arith.constant 0 : i32
    %c0_i32_0 = arith.constant 0 : i32
    return %c0_i32 : i32
  }
  func.func @transform_2(%arg0: i32) -> (i32, i32, i32) {
    %c0_i32 = arith.constant 0 : i32
    %c0_i32_0 = arith.constant 0 : i32
    %c0_i32_1 = arith.constant 0 : i32
    return %arg0, %c0_i32, %c0_i32_0 : i32, i32, i32
  }
  func.func @transform_3(%arg0: i32) -> (i32, i32) {
    %c0_i32 = arith.constant 0 : i32
    %c0_i32_0 = arith.constant 0 : i32
    %c0_i32_1 = arith.constant 0 : i32
    return %c0_i32, %c0_i32_0 : i32, i32
  }
  func.func @transform_4(%arg0: i32) -> (i32, i32) {
    %c0_i32 = arith.constant 0 : i32
    %c0_i32_0 = arith.constant 0 : i32
    %c0_i32_1 = arith.constant 0 : i32
    return %c0_i32, %c0_i32_0 : i32, i32
  }
  func.func @transform_5(%arg0: i32) -> (i32, i32) {
    %c0_i32 = arith.constant 0 : i32
    %c0_i32_0 = arith.constant 0 : i32
    %c0_i32_1 = arith.constant 0 : i32
    return %c0_i32, %c0_i32_0 : i32, i32
  }
}

</mosaic_0001>

<llo_original>
// kernel: tpu_custom_call.1
$region0: #{tpu_custom_call.1}
  #allocation0 [shape = 'u32[]', space=smem, size = 0x4, offset = 0x4, fixed_abs, tag = 'smem constant byte address 0x4 - core index']
  #allocation1 [shape = 'u32[72,128]{1,0:T(1,128)}', space=vmem, size = 0x9000, scoped, tag = 'internal scratch']
  #allocation2 [shape = 'f32[128,128]{1,0:T(8,128)}', space=vmem, size = 0x10000, scoped, tag = 'scratch operand']
  %s0 = inlined_call_operand.vmem [shape: s32[8,1], index: 0, kind: input, shape index: {}]
  %s1 = inlined_call_operand.vmem [shape: f32[4], index: 1, kind: input, shape index: {}]
  %s2 = inlined_call_operand.hbm [shape: f32[4,16,16], index: 2, kind: input, shape index: {}]
  %s3 = inlined_call_operand.vmem [shape: f32[8,128], index: 3, kind: input, shape index: {}]
  %s4 = inlined_call_operand.hbm [shape: f32[128,128], index: 4, kind: output, shape index: {0}]
  %s5 = inlined_call_operand.hbm [shape: f32[1,1], index: 5, kind: output, shape index: {1}]
  %6 = xla_tuple %s4, %s5
  %s7 = sld [smem:[#allocation0]]
  $region73: #{tpu_custom_call.1} parent=0
    _
  %s9 = ssub.s32 1, %s7
  %s10 = scalar_select 0, %s9, %s7
  $region1: #{tpu_custom_call.1} parent=0
    #allocation3 [shape = 'u8[512]{0}', space=smem, size = 0x200, scoped, tag = 'input window, operand 1, single buffered']
    #allocation4 [shape = 's32[2]{0}', space=sflag, size = 0x8, scoped, tag = 'scoped memory for tpu_custom_call.1']
    #allocation5 [shape = 's32[2]{0}', space=sflag, size = 0x8, scoped, tag = 'scoped memory for tpu_custom_call.1']
    #allocation6 [shape = 's32[2]{0}', space=sflag, size = 0x8, scoped, tag = 'scoped memory for tpu_custom_call.1']
    #allocation7 [shape = 's32[2]{0}', space=sflag, size = 0x8, scoped, tag = 'scoped memory for tpu_custom_call.1']
    #allocation8 [shape = 'u8[16384]{0}', space=vmem, size = 0x4000, scoped, tag = 'input window, operand 2']
    #allocation9 [shape = 'u8[65536]{0}', space=vmem, size = 0x10000, scoped, tag = 'output window, operand 0, single buffered']
    #allocation10 [shape = 'u8[512]{0}', space=smem, size = 0x200, scoped, tag = 'output window, operand 1, single buffered']
    %11 = vsyncpa [#allocation7], 0
    %12 = vsyncpa [#allocation4], 0
    %s13 = scalar_lea.sflag [#allocation4], 1
    %14 = vsyncpa %s13, 0
    %15 = vsyncpa [#allocation5], 0
    %16 = vsyncpa [#allocation6], 0
    loop: start=0, step=1, limit=6
    $region2: #{tpu_custom_call.1} parent=1 // loop_pre_header
      _
    $region3: #{tpu_custom_call.1} parent=1 // loop_header
      %s18 = sphi 0, %s22
      %p19 = scmp.ge.s32.totalorder %s18, 6
      %s26 = sphi 0, %s26
      %s28 = sphi 0, %s26
      %s29 = sphi 0, %s28
      %s43 = sphi 0, %s29
      %s47 = sphi 0, %s47
      %s49 = sphi 0, %s47
      %s50 = sphi 0, %s49
      %s64 = sphi 0, %s50
      %s70 = sphi 0, %s72
      %s73 = sphi 0, %s70
      %s74 = sphi 0, %s73
      %s90 = sphi 0, %s74
      %s94 = sphi 0, %s94
      %s96 = sphi 0, %s94
      %s97 = sphi 0, %s96
      %s111 = sphi 0, %s97
      %s115 = sphi 0, %s115
      %s117 = sphi 0, %s115
      %s118 = sphi 0, %s117
      %s132 = sphi 0, %s118
      %s136 = sphi 0, %s136
      %s138 = sphi 0, %s136
      %s139 = sphi 0, %s138
      %s153 = sphi 0, %s139
    $region4: #{tpu_custom_call.1} parent=1 // loop_header_branch
      %21 = sbr.rel (%p19) target = $region8
    $region5: #{tpu_custom_call.1} parent=1 // loop_body
      %s23 = ssub.s32 %s18, 1
      %s24 = ssub.s32 %s18, 2
      %s25 = sadd.s32 %s18, 1
      %s27 = sadd.s32 %s26, 1
      %p30 = scmp.eq.s32.totalorder %s18, 3
      %p31 = scmp.ne.s32.totalorder %s26, %s28
      %p32 = scmp.eq.s32.totalorder %s18, 0
      %p33 = por %p31, %p32
      %p34 = scmp.ne.s32.totalorder %s26, %s28
      %p35 = scmp.eq.s32.totalorder %s23, 3
      %p36 = por %p34, %p35
      %p37 = scmp.ne.s32.totalorder %s28, %s29
      %p38 = scmp.eq.s32.totalorder %s23, 0
      %p39 = por %p37, %p38
      %p40 = scmp.ne.s32.totalorder %s28, %s29
      %p41 = scmp.eq.s32.totalorder %s24, 3
      %p42 = por %p40, %p41
      %p44 = scmp.ne.s32.totalorder %s29, %s43
      %p45 = scmp.eq.s32.totalorder %s24, 0
      %p46 = por %p44, %p45
      %s48 = sadd.s32 %s47, 1
      %p51 = scmp.eq.s32.totalorder %s18, 3
      %p52 = scmp.ne.s32.totalorder %s47, %s49
      %p53 = scmp.eq.s32.totalorder %s18, 0
      %p54 = por %p52, %p53
      %p55 = scmp.ne.s32.totalorder %s47, %s49
      %p56 = scmp.eq.s32.totalorder %s23, 3
      %p57 = por %p55, %p56
      %p58 = scmp.ne.s32.totalorder %s49, %s50
      %p59 = scmp.eq.s32.totalorder %s23, 0
      %p60 = por %p58, %p59
      %p61 = scmp.ne.s32.totalorder %s49, %s50
      %p62 = scmp.eq.s32.totalorder %s24, 3
      %p63 = por %p61, %p62
      %p65 = scmp.ne.s32.totalorder %s50, %s64
      %p66 = scmp.eq.s32.totalorder %s24, 0
      %p67 = por %p65, %p66
      %s68 = ssub.s32 %s18, %s25
      %p69 = scmp.eq.s32.totalorder %s68, 0
      %s71 = sadd.s32 %s70, 1
      %s72 = scalar_select %p69, %s70, %s71
      %p75 = pneg %p69
      %p76 = scmp.eq.s32.totalorder %s18, 3
      %p77 = por %p75, %p76
      %p78 = scmp.ne.s32.totalorder %s70, %s73
      %p79 = scmp.eq.s32.totalorder %s18, 0
      %p80 = por %p78, %p79
      %p81 = scmp.ne.s32.totalorder %s70, %s73
      %p82 = scmp.eq.s32.totalorder %s23, 3
      %p83 = por %p81, %p82
      %p84 = scmp.ne.s32.totalorder %s73, %s74
      %p85 = scmp.eq.s32.totalorder %s23, 0
      %p86 = por %p84, %p85
      %p87 = scmp.ne.s32.totalorder %s73, %s74
      %p88 = scmp.eq.s32.totalorder %s24, 3
      %p89 = por %p87, %p88
      %p91 = scmp.ne.s32.totalorder %s74, %s90
      %p92 = scmp.eq.s32.totalorder %s24, 0
      %p93 = por %p91, %p92
      %s95 = sadd.s32 %s94, 1
      %p98 = scmp.eq.s32.totalorder %s18, 3
      %p99 = scmp.ne.s32.totalorder %s94, %s96
      %p100 = scmp.eq.s32.totalorder %s18, 0
      %p101 = por %p99, %p100
      %p102 = scmp.ne.s32.totalorder %s94, %s96
      %p103 = scmp.eq.s32.totalorder %s23, 3
      %p104 = por %p102, %p103
      %p105 = scmp.ne.s32.totalorder %s96, %s97
      %p106 = scmp.eq.s32.totalorder %s23, 0
      %p107 = por %p105, %p106
      %p108 = scmp.ne.s32.totalorder %s96, %s97
      %p109 = scmp.eq.s32.totalorder %s24, 3
      %p110 = por %p108, %p109
      %p112 = scmp.ne.s32.totalorder %s97, %s111
      %p113 = scmp.eq.s32.totalorder %s24, 0
      %p114 = por %p112, %p113
      %s116 = sadd.s32 %s115, 1
      %p119 = scmp.eq.s32.totalorder %s18, 3
      %p120 = scmp.ne.s32.totalorder %s115, %s117
      %p121 = scmp.eq.s32.totalorder %s18, 0
      %p122 = por %p120, %p121
      %p123 = scmp.ne.s32.totalorder %s115, %s117
      %p124 = scmp.eq.s32.totalorder %s23, 3
      %p125 = por %p123, %p124
      %p126 = scmp.ne.s32.totalorder %s117, %s118
      %p127 = scmp.eq.s32.totalorder %s23, 0
      %p128 = por %p126, %p127
      %p129 = scmp.ne.s32.totalorder %s117, %s118
      %p130 = scmp.eq.s32.totalorder %s24, 3
      %p131 = por %p129, %p130
      %p133 = scmp.ne.s32.totalorder %s118, %s132
      %p134 = scmp.eq.s32.totalorder %s24, 0
      %p135 = por %p133, %p134
      %s137 = sadd.s32 %s136, 1
      %p140 = scmp.eq.s32.totalorder %s18, 3
      %p141 = scmp.ne.s32.totalorder %s136, %s138
      %p142 = scmp.eq.s32.totalorder %s18, 0
      %p143 = por %p141, %p142
      %p144 = scmp.ne.s32.totalorder %s136, %s138
      %p145 = scmp.eq.s32.totalorder %s23, 3
      %p146 = por %p144, %p145
      %p147 = scmp.ne.s32.totalorder %s138, %s139
      %p148 = scmp.eq.s32.totalorder %s23, 0
      %p149 = por %p147, %p148
      %p150 = scmp.ne.s32.totalorder %s138, %s139
      %p151 = scmp.eq.s32.totalorder %s24, 3
      %p152 = por %p150, %p151
      %p154 = scmp.ne.s32.totalorder %s139, %s153
      %p155 = scmp.eq.s32.totalorder %s24, 0
      %p156 = por %p154, %p155
      %p157 = scmp.le.s32.totalorder 1, %s18
      %p158 = scmp.lt.s32.totalorder %s18, 5
      %p159 = pnand %p157, %p158
      %p160 = pneg %p159
      // Predicated region
      $region9: #{tpu_custom_call.1} parent=5 // pred_check
        _
      $region10: #{tpu_custom_call.1} parent=5 // pred_check_branch
        %162 = sbr.rel (%p159) target = $region12
      $region11: #{tpu_custom_call.1} parent=5 // pred_region
        %s163 = ssub.s32 %s18, 1
        // Predicated region
        $region13: #{tpu_custom_call.1} parent=11 // pred_check
          %p164 = pneg %p39
        $region14: #{tpu_custom_call.1} parent=11 // pred_check_branch
          %166 = sbr.rel (%p164) target = $region16
        $region15: #{tpu_custom_call.1} parent=11 // pred_region
          _
        $region16: #{tpu_custom_call.1} parent=11 // pred_fallthru
          _
        // Predicated region
        $region17: #{tpu_custom_call.1} parent=11 // pred_check
          %p167 = pneg %p60
        $region18: #{tpu_custom_call.1} parent=11 // pred_check_branch
          %169 = sbr.rel (%p167) target = $region20
        $region19: #{tpu_custom_call.1} parent=11 // pred_region
          %171 = vsyncadd [#allocation7], 0
          %s173 = sshll.u32 %s1, 4
          %s174 = int_to_ptr.vmem [resolvable:$true] %s173
          %176 = dma.vmem_to_smem %s174, 16, [#allocation3], [#allocation7]
        $region20: #{tpu_custom_call.1} parent=11 // pred_fallthru
          _
        // Predicated region
        $region21: #{tpu_custom_call.1} parent=11 // pred_check
          %p177 = pneg %p107
        $region22: #{tpu_custom_call.1} parent=11 // pred_check_branch
          %179 = sbr.rel (%p177) target = $region24
        $region23: #{tpu_custom_call.1} parent=11 // pred_region
          _
        $region24: #{tpu_custom_call.1} parent=11 // pred_fallthru
          _
      $region12: #{tpu_custom_call.1} parent=5 // pred_fallthru
        _
      %p180 = scmp.lt.s32.totalorder %s18, 4
      // Predicated region
      $region25: #{tpu_custom_call.1} parent=5 // pred_check
        %p181 = pneg %p180
      $region26: #{tpu_custom_call.1} parent=5 // pred_check_branch
        %183 = sbr.rel (%p181) target = $region28
      $region27: #{tpu_custom_call.1} parent=5 // pred_region
        // Predicated region
        $region29: #{tpu_custom_call.1} parent=27 // pred_check
          %p184 = pneg %p80
        $region30: #{tpu_custom_call.1} parent=27 // pred_check_branch
          %186 = sbr.rel (%p184) target = $region32
        $region31: #{tpu_custom_call.1} parent=27 // pred_region
          %s187 = sand.u32 %s70, 1
          %s188 = scalar_lea.sflag [#allocation4], %s187
          %s189 = sand.u32 %s70, 1
          %s190 = smul.addr %s189, 16
          %s191 = scalar_lea.vmem [#allocation8], %s190
          %193 = vsyncadd %s188, 0
          %s194 = smul.addr %s18, 2
          %s195 = smul.addr %s194, 8
          %s196 = scalar_lea.hbm %s2, %s195
          %s197 = sshll.u32 %s196, 4
          %s198 = int_to_ptr.hbm [resolvable:$true] %s197
          %s199 = sshll.u32 %s191, 4
          %s200 = int_to_ptr.vmem [resolvable:$true] %s199
          %205 = dma.hbm_to_vmem [thread:$0]  %s198, 256, %s200, %s188, 128, 128, 8
        $region32: #{tpu_custom_call.1} parent=27 // pred_fallthru
          _
      $region28: #{tpu_custom_call.1} parent=5 // pred_fallthru
        _
      %p206 = scmp.le.s32.totalorder 1, %s18
      %p207 = scmp.lt.s32.totalorder %s18, 5
      %p208 = pnand %p206, %p207
      %p209 = pneg %p208
      // Predicated region
      $region33: #{tpu_custom_call.1} parent=5 // pred_check
        _
      $region34: #{tpu_custom_call.1} parent=5 // pred_check_branch
        %211 = sbr.rel (%p208) target = $region36
      $region35: #{tpu_custom_call.1} parent=5 // pred_region
        %s212 = ssub.s32 %s18, 1
        // Predicated region
        $region37: #{tpu_custom_call.1} parent=35 // pred_check
          %p213 = pneg %p60
        $region38: #{tpu_custom_call.1} parent=35 // pred_check_branch
          %215 = sbr.rel (%p213) target = $region40
        $region39: #{tpu_custom_call.1} parent=35 // pred_region
          %217 = dma.done [#allocation7], 16
        $region40: #{tpu_custom_call.1} parent=35 // pred_fallthru
          _
        %s218 = sand.u32 %s73, 1
        %s219 = scalar_lea.sflag [#allocation4], %s218
        %s220 = sand.u32 %s73, 1
        %s221 = smul.addr %s220, 16
        %s222 = scalar_lea.vmem [#allocation8], %s221
        // Predicated region
        $region41: #{tpu_custom_call.1} parent=35 // pred_check
          %p223 = pneg %p86
        $region42: #{tpu_custom_call.1} parent=35 // pred_check_branch
          %225 = sbr.rel (%p223) target = $region44
        $region43: #{tpu_custom_call.1} parent=35 // pred_region
          %227 = dma.done %s219, 256
        $region44: #{tpu_custom_call.1} parent=35 // pred_fallthru
          _
        %228 = sfence
        %p229 = pneg %p39
        %p230 = pneg %p36
        %p231 = pneg %p60
        %p232 = pneg %p57
        %s233 = sand.u32 %s73, 1
        %s234 = scalar_lea.sflag [#allocation4], %s233
        %s235 = sand.u32 %s73, 1
        %s236 = smul.addr %s235, 16
        %s237 = scalar_lea.vmem [#allocation8], %s236
        %p238 = pneg %p86
        %p239 = pneg %p83
        %p240 = pneg %p107
        %p241 = pneg %p104
        %p242 = pneg %p128
        %p243 = pneg %p125
        %p244 = pneg %p149
        %p245 = pneg %p146
        %s246 = sld [smem:[#allocation3]]
        %s247 = sld [smem:[#allocation3 + $0x1]]
        %s248 = smin.f32 %s246, %s247
        %s249 = sld [smem:[#allocation3 + $0x2]]
        %s250 = smin.f32 %s248, %s249
        %s251 = sld [smem:[#allocation3 + $0x3]]
        %s252 = smin.f32 %s250, %s251
        %s253 = sld [smem:[#allocation3 + %s23]]
        %s254 = sadd.f32 %s253, %s252
        %p255 = scmp.eq.s32.totalorder %s23, 0
        // Predicated region
        $region45: #{tpu_custom_call.1} parent=35 // pred_check
          %p256 = pneg %p255
        $region46: #{tpu_custom_call.1} parent=35 // pred_check_branch
          %258 = sbr.rel (%p256) target = $region48
        $region47: #{tpu_custom_call.1} parent=35 // pred_region
          %259 = vst [vmem:[#allocation2] sm:$0xff] 0.0
          %260 = vst [vmem:[#allocation2 + $0x8] sm:$0xff] 0.0
          %261 = vst [vmem:[#allocation2 + $0x10] sm:$0xff] 0.0
          %262 = vst [vmem:[#allocation2 + $0x18] sm:$0xff] 0.0
          %263 = vst [vmem:[#allocation2 + $0x20] sm:$0xff] 0.0
          %264 = vst [vmem:[#allocation2 + $0x28] sm:$0xff] 0.0
          %265 = vst [vmem:[#allocation2 + $0x30] sm:$0xff] 0.0
          %266 = vst [vmem:[#allocation2 + $0x38] sm:$0xff] 0.0
          %267 = vst [vmem:[#allocation2 + $0x40] sm:$0xff] 0.0
          %268 = vst [vmem:[#allocation2 + $0x48] sm:$0xff] 0.0
          %269 = vst [vmem:[#allocation2 + $0x50] sm:$0xff] 0.0
          %270 = vst [vmem:[#allocation2 + $0x58] sm:$0xff] 0.0
          %271 = vst [vmem:[#allocation2 + $0x60] sm:$0xff] 0.0
          %272 = vst [vmem:[#allocation2 + $0x68] sm:$0xff] 0.0
          %273 = vst [vmem:[#allocation2 + $0x70] sm:$0xff] 0.0
          %274 = vst [vmem:[#allocation2 + $0x78] sm:$0xff] 0.0
        $region48: #{tpu_custom_call.1} parent=35 // pred_fallthru
          _
        %v275 = vld [vmem:[#allocation2] sm:$0xff]
        %v276 = vld [vmem:[#allocation2 + $0x8] sm:$0xff]
        %v277 = vld [vmem:[%s222] sm:$0xff]
        %v278 = vld [vmem:[%s222 + $0x8] sm:$0xff]
        %v279 = vstv %s254
        %v280 = vmul.f32 %v279, %v277
        %v281 = vmul.f32 %v279, %v278
        %v282 = vadd.f32 %v275, %v280
        %v283 = vadd.f32 %v276, %v281
        %vm284 = vcmask 130048
        %285 = vst.msk [vmem:[#allocation2] sm:$0xff] %vm284, %v282
        %286 = vst.msk [vmem:[#allocation2 + $0x8] sm:$0xff] %vm284, %v283
        %p287 = scmp.eq.s32.totalorder %s23, 3
        // Predicated region
        $region49: #{tpu_custom_call.1} parent=35 // pred_check
          %p288 = pneg %p287
        $region50: #{tpu_custom_call.1} parent=35 // pred_check_branch
          %290 = sbr.rel (%p288) target = $region52
        $region51: #{tpu_custom_call.1} parent=35 // pred_region
          %v291 = vld [vmem:[#allocation2] sm:$0xff]
          %v292 = vld [vmem:[#allocation2 + $0x8] sm:$0xff]
          %v293 = vld [vmem:[#allocation2 + $0x10] sm:$0xff]
          %v294 = vld [vmem:[#allocation2 + $0x18] sm:$0xff]
          %v295 = vld [vmem:[#allocation2 + $0x20] sm:$0xff]
          %v296 = vld [vmem:[#allocation2 + $0x28] sm:$0xff]
          %v297 = vld [vmem:[#allocation2 + $0x30] sm:$0xff]
          %v298 = vld [vmem:[#allocation2 + $0x38] sm:$0xff]
          %v299 = vld [vmem:[#allocation2 + $0x40] sm:$0xff]
          %v300 = vld [vmem:[#allocation2 + $0x48] sm:$0xff]
          %v301 = vld [vmem:[#allocation2 + $0x50] sm:$0xff]
          %v302 = vld [vmem:[#allocation2 + $0x58] sm:$0xff]
          %v303 = vld [vmem:[#allocation2 + $0x60] sm:$0xff]
          %v304 = vld [vmem:[#allocation2 + $0x68] sm:$0xff]
          %v305 = vld [vmem:[#allocation2 + $0x70] sm:$0xff]
          %v306 = vld [vmem:[#allocation2 + $0x78] sm:$0xff]
          %v307 = vpack.c.bf16 %v292, %v291
          %v308 = vpack.c.bf16 %v294, %v293
          %v309 = vpack.c.bf16 %v296, %v295
          %v310 = vpack.c.bf16 %v298, %v297
          %v311 = vpack.c.bf16 %v300, %v299
          %v312 = vpack.c.bf16 %v302, %v301
          %v313 = vpack.c.bf16 %v304, %v303
          %v314 = vpack.c.bf16 %v306, %v305
          %v315 = vlaneseq
          %v316 = vshrl.u32 %v315, 7
          %v317 = vadd.s32 %v316, 8
          %v318 = vadd.s32 %v316, 16
          %v319 = vadd.s32 %v316, 24
          %v320 = vadd.s32 %v316, 32
          %v321 = vadd.s32 %v316, 40
          %v322 = vadd.s32 %v316, 48
          %v323 = vadd.s32 %v316, 56
          %v324 = vadd.s32 %v316, 64
          %v325 = vadd.s32 %v316, 72
          %v326 = vadd.s32 %v316, 80
          %v327 = vadd.s32 %v316, 88
          %v328 = vadd.s32 %v316, 96
          %v329 = vadd.s32 %v316, 104
          %v330 = vadd.s32 %v316, 112
          %v331 = vadd.s32 %v316, 120
          %v332 = vlaneseq
          %v333 = vand.u32 %v332, 127
          %vm334 = vcmp.eq.s32.totalorder %v316, %v333
          %vm335 = vcmp.eq.s32.totalorder %v317, %v333
          %vm336 = vcmp.eq.s32.totalorder %v318, %v333
          %vm337 = vcmp.eq.s32.totalorder %v319, %v333
          %vm338 = vcmp.eq.s32.totalorder %v320, %v333
          %vm339 = vcmp.eq.s32.totalorder %v321, %v333
          %vm340 = vcmp.eq.s32.totalorder %v322, %v333
          %vm341 = vcmp.eq.s32.totalorder %v323, %v333
          %vm342 = vcmp.eq.s32.totalorder %v324, %v333
          %vm343 = vcmp.eq.s32.totalorder %v325, %v333
          %vm344 = vcmp.eq.s32.totalorder %v326, %v333
          %vm345 = vcmp.eq.s32.totalorder %v327, %v333
          %vm346 = vcmp.eq.s32.totalorder %v328, %v333
          %vm347 = vcmp.eq.s32.totalorder %v329, %v333
          %vm348 = vcmp.eq.s32.totalorder %v330, %v333
          %vm349 = vcmp.eq.s32.totalorder %v331, %v333
          %v350 = vmul.f32 %v291, 0.125
          %v351 = vmul.f32 %v292, 0.125
          %v352 = vmul.f32 %v293, 0.125
          %v353 = vmul.f32 %v294, 0.125
          %v354 = vmul.f32 %v295, 0.125
          %v355 = vmul.f32 %v296, 0.125
          %v356 = vmul.f32 %v297, 0.125
          %v357 = vmul.f32 %v298, 0.125
          %v358 = vmul.f32 %v299, 0.125
          %v359 = vmul.f32 %v300, 0.125
          %v360 = vmul.f32 %v301, 0.125
          %v361 = vmul.f32 %v302, 0.125
          %v362 = vmul.f32 %v303, 0.125
          %v363 = vmul.f32 %v304, 0.125
          %v364 = vmul.f32 %v305, 0.125
          %v365 = vmul.f32 %v306, 0.125
          %v366 = vadd.f32 %v350, 1.0
          %v367 = vadd.f32 %v351, 1.0
          %v368 = vadd.f32 %v352, 1.0
          %v369 = vadd.f32 %v353, 1.0
          %v370 = vadd.f32 %v354, 1.0
          %v371 = vadd.f32 %v355, 1.0
          %v372 = vadd.f32 %v356, 1.0
          %v373 = vadd.f32 %v357, 1.0
          %v374 = vadd.f32 %v358, 1.0
          %v375 = vadd.f32 %v359, 1.0
          %v376 = vadd.f32 %v360, 1.0
          %v377 = vadd.f32 %v361, 1.0
          %v378 = vadd.f32 %v362, 1.0
          %v379 = vadd.f32 %v363, 1.0
          %v380 = vadd.f32 %v364, 1.0
          %v381 = vadd.f32 %v365, 1.0
          %v382 = vsel %vm334, %v366, %v350
          %v383 = vsel %vm335, %v367, %v351
          %v384 = vsel %vm336, %v368, %v352
          %v385 = vsel %vm337, %v369, %v353
          %v386 = vsel %vm338, %v370, %v354
          %v387 = vsel %vm339, %v371, %v355
          %v388 = vsel %vm340, %v372, %v356
          %v389 = vsel %vm341, %v373, %v357
          %v390 = vsel %vm342, %v374, %v358
          %v391 = vsel %vm343, %v375, %v359
          %v392 = vsel %vm344, %v376, %v360
          %v393 = vsel %vm345, %v377, %v361
          %v394 = vsel %vm346, %v378, %v362
          %v395 = vsel %vm347, %v379, %v363
          %v396 = vsel %vm348, %v380, %v364
          %v397 = vsel %vm349, %v381, %v365
          %v398 = vpack.c.bf16 %v383, %v382
          %v399 = vpack.c.bf16 %v385, %v384
          %v400 = vpack.c.bf16 %v387, %v386
          %v401 = vpack.c.bf16 %v389, %v388
          %v402 = vpack.c.bf16 %v391, %v390
          %v403 = vpack.c.bf16 %v393, %v392
          %v404 = vpack.c.bf16 %v395, %v394
          %v405 = vpack.c.bf16 %v397, %v396
          %406 = vmatpush.bf16.msra.mxu0 %v405
          %407 = vmatpush.bf16.msra.mxu0 %v404
          %408 = vmatpush.bf16.msra.mxu0 %v403
          %409 = vmatpush.bf16.msra.mxu0 %v402
          %410 = vmatpush.bf16.msra.mxu0 %v401
          %411 = vmatpush.bf16.msra.mxu0 %v400
          %412 = vmatpush.bf16.msra.mxu0 %v399
          %413 = vmatpush.bf16.msra.mxu0 %v398
          %414 = vmatmul.bf16.gmra.mxu0 %v307
          %v415 = vpop.f32.mrf.mxu0
          %v416 = vadd.f32 0.0, %v415
          %v417 = vpop.f32.mrf.mxu0
          %v418 = vadd.f32 0.0, %v417
          %419 = vmatmul.bf16.gmra.mxu0 %v308
          %v420 = vpop.f32.mrf.mxu0
          %v421 = vadd.f32 0.0, %v420
          %v422 = vpop.f32.mrf.mxu0
          %v423 = vadd.f32 0.0, %v422
          %424 = vmatmul.bf16.gmra.mxu0 %v309
          %v425 = vpop.f32.mrf.mxu0
          %v426 = vadd.f32 0.0, %v425
          %v427 = vpop.f32.mrf.mxu0
          %v428 = vadd.f32 0.0, %v427
          %429 = vmatmul.bf16.gmra.mxu0 %v310
          %v430 = vpop.f32.mrf.mxu0
          %v431 = vadd.f32 0.0, %v430
          %v432 = vpop.f32.mrf.mxu0
          %v433 = vadd.f32 0.0, %v432
          %434 = vmatmul.bf16.gmra.mxu0 %v311
          %v435 = vpop.f32.mrf.mxu0
          %v436 = vadd.f32 0.0, %v435
          %v437 = vpop.f32.mrf.mxu0
          %v438 = vadd.f32 0.0, %v437
          %439 = vmatmul.bf16.gmra.mxu0 %v312
          %v440 = vpop.f32.mrf.mxu0
          %v441 = vadd.f32 0.0, %v440
          %v442 = vpop.f32.mrf.mxu0
          %v443 = vadd.f32 0.0, %v442
          %444 = vmatmul.bf16.gmra.mxu0 %v313
          %v445 = vpop.f32.mrf.mxu0
          %v446 = vadd.f32 0.0, %v445
          %v447 = vpop.f32.mrf.mxu0
          %v448 = vadd.f32 0.0, %v447
          %449 = vmatmul.bf16.gmra.mxu0 %v314
          %v450 = vpop.f32.mrf.mxu0
          %v451 = vadd.f32 0.0, %v450
          %v452 = vpop.f32.mrf.mxu0
          %v453 = vadd.f32 0.0, %v452
          %454 = vdwg.mxu0
          %v455 = vmul.f32 %v416, 0.14285715
          %v456 = vmul.f32 %v418, 0.14285715
          %v457 = vmul.f32 %v421, 0.14285715
          %v458 = vmul.f32 %v423, 0.14285715
          %v459 = vmul.f32 %v426, 0.14285715
          %v460 = vmul.f32 %v428, 0.14285715
          %v461 = vmul.f32 %v431, 0.14285715
          %v462 = vmul.f32 %v433, 0.14285715
          %v463 = vmul.f32 %v436, 0.14285715
          %v464 = vmul.f32 %v438, 0.14285715
          %v465 = vmul.f32 %v441, 0.14285715
          %v466 = vmul.f32 %v443, 0.14285715
          %v467 = vmul.f32 %v446, 0.14285715
          %v468 = vmul.f32 %v448, 0.14285715
          %v469 = vmul.f32 %v451, 0.14285715
          %v470 = vmul.f32 %v453, 0.14285715
          %v471 = vadd.f32 %v455, 1.0
          %v472 = vadd.f32 %v456, 1.0
          %v473 = vadd.f32 %v457, 1.0
          %v474 = vadd.f32 %v458, 1.0
          %v475 = vadd.f32 %v459, 1.0
          %v476 = vadd.f32 %v460, 1.0
          %v477 = vadd.f32 %v461, 1.0
          %v478 = vadd.f32 %v462, 1.0
          %v479 = vadd.f32 %v463, 1.0
          %v480 = vadd.f32 %v464, 1.0
          %v481 = vadd.f32 %v465, 1.0
          %v482 = vadd.f32 %v466, 1.0
          %v483 = vadd.f32 %v467, 1.0
          %v484 = vadd.f32 %v468, 1.0
          %v485 = vadd.f32 %v469, 1.0
          %v486 = vadd.f32 %v470, 1.0
          %v487 = vsel %vm334, %v471, %v455
          %v488 = vsel %vm335, %v472, %v456
          %v489 = vsel %vm336, %v473, %v457
          %v490 = vsel %vm337, %v474, %v458
          %v491 = vsel %vm338, %v475, %v459
          %v492 = vsel %vm339, %v476, %v460
          %v493 = vsel %vm340, %v477, %v461
          %v494 = vsel %vm341, %v478, %v462
          %v495 = vsel %vm342, %v479, %v463
          %v496 = vsel %vm343, %v480, %v464
          %v497 = vsel %vm344, %v481, %v465
          %v498 = vsel %vm345, %v482, %v466
          %v499 = vsel %vm346, %v483, %v467
          %v500 = vsel %vm347, %v484, %v468
          %v501 = vsel %vm348, %v485, %v469
          %v502 = vsel %vm349, %v486, %v470
          %v503 = vpack.c.bf16 %v488, %v487
          %v504 = vpack.c.bf16 %v490, %v489
          %v505 = vpack.c.bf16 %v492, %v491
          %v506 = vpack.c.bf16 %v494, %v493
          %v507 = vpack.c.bf16 %v496, %v495
          %v508 = vpack.c.bf16 %v498, %v497
          %v509 = vpack.c.bf16 %v500, %v499
          %v510 = vpack.c.bf16 %v502, %v501
          %511 = vmatpush.bf16.msra.mxu0 %v510
          %512 = vmatpush.bf16.msra.mxu0 %v509
          %513 = vmatpush.bf16.msra.mxu0 %v508
          %514 = vmatpush.bf16.msra.mxu0 %v507
          %515 = vmatpush.bf16.msra.mxu0 %v506
          %516 = vmatpush.bf16.msra.mxu0 %v505
          %517 = vmatpush.bf16.msra.mxu0 %v504
          %518 = vmatpush.bf16.msra.mxu0 %v503
          %519 = vmatmul.bf16.gmra.mxu0 %v307
          %v520 = vpop.f32.mrf.mxu0
          %v521 = vadd.f32 0.0, %v520
          %v522 = vpop.f32.mrf.mxu0
          %v523 = vadd.f32 0.0, %v522
          %524 = vmatmul.bf16.gmra.mxu0 %v308
          %v525 = vpop.f32.mrf.mxu0
          %v526 = vadd.f32 0.0, %v525
          %v527 = vpop.f32.mrf.mxu0
          %v528 = vadd.f32 0.0, %v527
          %529 = vmatmul.bf16.gmra.mxu0 %v309
          %v530 = vpop.f32.mrf.mxu0
          %v531 = vadd.f32 0.0, %v530
          %v532 = vpop.f32.mrf.mxu0
          %v533 = vadd.f32 0.0, %v532
          %534 = vmatmul.bf16.gmra.mxu0 %v310
          %v535 = vpop.f32.mrf.mxu0
          %v536 = vadd.f32 0.0, %v535
          %v537 = vpop.f32.mrf.mxu0
          %v538 = vadd.f32 0.0, %v537
          %539 = vmatmul.bf16.gmra.mxu0 %v311
          %v540 = vpop.f32.mrf.mxu0
          %v541 = vadd.f32 0.0, %v540
          %v542 = vpop.f32.mrf.mxu0
          %v543 = vadd.f32 0.0, %v542
          %544 = vmatmul.bf16.gmra.mxu0 %v312
          %v545 = vpop.f32.mrf.mxu0
          %v546 = vadd.f32 0.0, %v545
          %v547 = vpop.f32.mrf.mxu0
          %v548 = vadd.f32 0.0, %v547
          %549 = vmatmul.bf16.gmra.mxu0 %v313
          %v550 = vpop.f32.mrf.mxu0
          %v551 = vadd.f32 0.0, %v550
          %v552 = vpop.f32.mrf.mxu0
          %v553 = vadd.f32 0.0, %v552
          %554 = vmatmul.bf16.gmra.mxu0 %v314
          %v555 = vpop.f32.mrf.mxu0
          %v556 = vadd.f32 0.0, %v555
          %v557 = vpop.f32.mrf.mxu0
          %v558 = vadd.f32 0.0, %v557
          %559 = vdwg.mxu0
          %v560 = vmul.f32 %v521, 0.16666667
          %v561 = vmul.f32 %v523, 0.16666667
          %v562 = vmul.f32 %v526, 0.16666667
          %v563 = vmul.f32 %v528, 0.16666667
          %v564 = vmul.f32 %v531, 0.16666667
          %v565 = vmul.f32 %v533, 0.16666667
          %v566 = vmul.f32 %v536, 0.16666667
          %v567 = vmul.f32 %v538, 0.16666667
          %v568 = vmul.f32 %v541, 0.16666667
          %v569 = vmul.f32 %v543, 0.16666667
          %v570 = vmul.f32 %v546, 0.16666667
          %v571 = vmul.f32 %v548, 0.16666667
          %v572 = vmul.f32 %v551, 0.16666667
          %v573 = vmul.f32 %v553, 0.16666667
          %v574 = vmul.f32 %v556, 0.16666667
          %v575 = vmul.f32 %v558, 0.16666667
          %v576 = vadd.f32 %v560, 1.0
          %v577 = vadd.f32 %v561, 1.0
          %v578 = vadd.f32 %v562, 1.0
          %v579 = vadd.f32 %v563, 1.0
          %v580 = vadd.f32 %v564, 1.0
          %v581 = vadd.f32 %v565, 1.0
          %v582 = vadd.f32 %v566, 1.0
          %v583 = vadd.f32 %v567, 1.0
          %v584 = vadd.f32 %v568, 1.0
          %v585 = vadd.f32 %v569, 1.0
          %v586 = vadd.f32 %v570, 1.0
          %v587 = vadd.f32 %v571, 1.0
          %v588 = vadd.f32 %v572, 1.0
          %v589 = vadd.f32 %v573, 1.0
          %v590 = vadd.f32 %v574, 1.0
          %v591 = vadd.f32 %v575, 1.0
          %v592 = vsel %vm334, %v576, %v560
          %v593 = vsel %vm335, %v577, %v561
          %v594 = vsel %vm336, %v578, %v562
          %v595 = vsel %vm337, %v579, %v563
          %v596 = vsel %vm338, %v580, %v564
          %v597 = vsel %vm339, %v581, %v565
          %v598 = vsel %vm340, %v582, %v566
          %v599 = vsel %vm341, %v583, %v567
          %v600 = vsel %vm342, %v584, %v568
          %v601 = vsel %vm343, %v585, %v569
          %v602 = vsel %vm344, %v586, %v570
          %v603 = vsel %vm345, %v587, %v571
          %v604 = vsel %vm346, %v588, %v572
          %v605 = vsel %vm347, %v589, %v573
          %v606 = vsel %vm348, %v590, %v574
          %v607 = vsel %vm349, %v591, %v575
          %v608 = vpack.c.bf16 %v593, %v592
          %v609 = vpack.c.bf16 %v595, %v594
          %v610 = vpack.c.bf16 %v597, %v596
          %v611 = vpack.c.bf16 %v599, %v598
          %v612 = vpack.c.bf16 %v601, %v600
          %v613 = vpack.c.bf16 %v603, %v602
          %v614 = vpack.c.bf16 %v605, %v604
          %v615 = vpack.c.bf16 %v607, %v606
          %616 = vmatpush.bf16.msra.mxu0 %v615
          %617 = vmatpush.bf16.msra.mxu0 %v614
          %618 = vmatpush.bf16.msra.mxu0 %v613
          %619 = vmatpush.bf16.msra.mxu0 %v612
          %620 = vmatpush.bf16.msra.mxu0 %v611
          %621 = vmatpush.bf16.msra.mxu0 %v610
          %622 = vmatpush.bf16.msra.mxu0 %v609
          %623 = vmatpush.bf16.msra.mxu0 %v608
          %624 = vmatmul.bf16.gmra.mxu0 %v307
          %v625 = vpop.f32.mrf.mxu0
          %v626 = vadd.f32 0.0, %v625
          %v627 = vpop.f32.mrf.mxu0
          %v628 = vadd.f32 0.0, %v627
          %629 = vmatmul.bf16.gmra.mxu0 %v308
          %v630 = vpop.f32.mrf.mxu0
          %v631 = vadd.f32 0.0, %v630
          %v632 = vpop.f32.mrf.mxu0
          %v633 = vadd.f32 0.0, %v632
          %634 = vmatmul.bf16.gmra.mxu0 %v309
          %v635 = vpop.f32.mrf.mxu0
          %v636 = vadd.f32 0.0, %v635
          %v637 = vpop.f32.mrf.mxu0
          %v638 = vadd.f32 0.0, %v637
          %639 = vmatmul.bf16.gmra.mxu0 %v310
          %v640 = vpop.f32.mrf.mxu0
          %v641 = vadd.f32 0.0, %v640
          %v642 = vpop.f32.mrf.mxu0
          %v643 = vadd.f32 0.0, %v642
          %644 = vmatmul.bf16.gmra.mxu0 %v311
          %v645 = vpop.f32.mrf.mxu0
          %v646 = vadd.f32 0.0, %v645
          %v647 = vpop.f32.mrf.mxu0
          %v648 = vadd.f32 0.0, %v647
          %649 = vmatmul.bf16.gmra.mxu0 %v312
          %v650 = vpop.f32.mrf.mxu0
          %v651 = vadd.f32 0.0, %v650
          %v652 = vpop.f32.mrf.mxu0
          %v653 = vadd.f32 0.0, %v652
          %654 = vmatmul.bf16.gmra.mxu0 %v313
          %v655 = vpop.f32.mrf.mxu0
          %v656 = vadd.f32 0.0, %v655
          %v657 = vpop.f32.mrf.mxu0
          %v658 = vadd.f32 0.0, %v657
          %659 = vmatmul.bf16.gmra.mxu0 %v314
          %v660 = vpop.f32.mrf.mxu0
          %v661 = vadd.f32 0.0, %v660
          %v662 = vpop.f32.mrf.mxu0
          %v663 = vadd.f32 0.0, %v662
          %664 = vdwg.mxu0
          %v665 = vmul.f32 %v626, 0.2
          %v666 = vmul.f32 %v628, 0.2
          %v667 = vmul.f32 %v631, 0.2
          %v668 = vmul.f32 %v633, 0.2
          %v669 = vmul.f32 %v636, 0.2
          %v670 = vmul.f32 %v638, 0.2
          %v671 = vmul.f32 %v641, 0.2
          %v672 = vmul.f32 %v643, 0.2
          %v673 = vmul.f32 %v646, 0.2
          %v674 = vmul.f32 %v648, 0.2
          %v675 = vmul.f32 %v651, 0.2
          %v676 = vmul.f32 %v653, 0.2
          %v677 = vmul.f32 %v656, 0.2
          %v678 = vmul.f32 %v658, 0.2
          %v679 = vmul.f32 %v661, 0.2
          %v680 = vmul.f32 %v663, 0.2
          %v681 = vadd.f32 %v665, 1.0
          %v682 = vadd.f32 %v666, 1.0
          %v683 = vadd.f32 %v667, 1.0
          %v684 = vadd.f32 %v668, 1.0
          %v685 = vadd.f32 %v669, 1.0
          %v686 = vadd.f32 %v670, 1.0
          %v687 = vadd.f32 %v671, 1.0
          %v688 = vadd.f32 %v672, 1.0
          %v689 = vadd.f32 %v673, 1.0
          %v690 = vadd.f32 %v674, 1.0
          %v691 = vadd.f32 %v675, 1.0
          %v692 = vadd.f32 %v676, 1.0
          %v693 = vadd.f32 %v677, 1.0
          %v694 = vadd.f32 %v678, 1.0
          %v695 = vadd.f32 %v679, 1.0
          %v696 = vadd.f32 %v680, 1.0
          %v697 = vsel %vm334, %v681, %v665
          %v698 = vsel %vm335, %v682, %v666
          %v699 = vsel %vm336, %v683, %v667
          %v700 = vsel %vm337, %v684, %v668
          %v701 = vsel %vm338, %v685, %v669
          %v702 = vsel %vm339, %v686, %v670
          %v703 = vsel %vm340, %v687, %v671
          %v704 = vsel %vm341, %v688, %v672
          %v705 = vsel %vm342, %v689, %v673
          %v706 = vsel %vm343, %v690, %v674
          %v707 = vsel %vm344, %v691, %v675
          %v708 = vsel %vm345, %v692, %v676
          %v709 = vsel %vm346, %v693, %v677
          %v710 = vsel %vm347, %v694, %v678
          %v711 = vsel %vm348, %v695, %v679
          %v712 = vsel %vm349, %v696, %v680
          %v713 = vpack.c.bf16 %v698, %v697
          %v714 = vpack.c.bf16 %v700, %v699
          %v715 = vpack.c.bf16 %v702, %v701
          %v716 = vpack.c.bf16 %v704, %v703
          %v717 = vpack.c.bf16 %v706, %v705
          %v718 = vpack.c.bf16 %v708, %v707
          %v719 = vpack.c.bf16 %v710, %v709
          %v720 = vpack.c.bf16 %v712, %v711
          %721 = vmatpush.bf16.msra.mxu0 %v720
          %722 = vmatpush.bf16.msra.mxu0 %v719
          %723 = vmatpush.bf16.msra.mxu0 %v718
          %724 = vmatpush.bf16.msra.mxu0 %v717
          %725 = vmatpush.bf16.msra.mxu0 %v716
          %726 = vmatpush.bf16.msra.mxu0 %v715
          %727 = vmatpush.bf16.msra.mxu0 %v714
          %728 = vmatpush.bf16.msra.mxu0 %v713
          %729 = vmatmul.bf16.gmra.mxu0 %v307
          %v730 = vpop.f32.mrf.mxu0
          %v731 = vadd.f32 0.0, %v730
          %v732 = vpop.f32.mrf.mxu0
          %v733 = vadd.f32 0.0, %v732
          %734 = vmatmul.bf16.gmra.mxu0 %v308
          %v735 = vpop.f32.mrf.mxu0
          %v736 = vadd.f32 0.0, %v735
          %v737 = vpop.f32.mrf.mxu0
          %v738 = vadd.f32 0.0, %v737
          %739 = vmatmul.bf16.gmra.mxu0 %v309
          %v740 = vpop.f32.mrf.mxu0
          %v741 = vadd.f32 0.0, %v740
          %v742 = vpop.f32.mrf.mxu0
          %v743 = vadd.f32 0.0, %v742
          %744 = vmatmul.bf16.gmra.mxu0 %v310
          %v745 = vpop.f32.mrf.mxu0
          %v746 = vadd.f32 0.0, %v745
          %v747 = vpop.f32.mrf.mxu0
          %v748 = vadd.f32 0.0, %v747
          %749 = vmatmul.bf16.gmra.mxu0 %v311
          %v750 = vpop.f32.mrf.mxu0
          %v751 = vadd.f32 0.0, %v750
          %v752 = vpop.f32.mrf.mxu0
          %v753 = vadd.f32 0.0, %v752
          %754 = vmatmul.bf16.gmra.mxu0 %v312
          %v755 = vpop.f32.mrf.mxu0
          %v756 = vadd.f32 0.0, %v755
          %v757 = vpop.f32.mrf.mxu0
          %v758 = vadd.f32 0.0, %v757
          %759 = vmatmul.bf16.gmra.mxu0 %v313
          %v760 = vpop.f32.mrf.mxu0
          %v761 = vadd.f32 0.0, %v760
          %v762 = vpop.f32.mrf.mxu0
          %v763 = vadd.f32 0.0, %v762
          %764 = vmatmul.bf16.gmra.mxu0 %v314
          %v765 = vpop.f32.mrf.mxu0
          %v766 = vadd.f32 0.0, %v765
          %v767 = vpop.f32.mrf.mxu0
          %v768 = vadd.f32 0.0, %v767
          %769 = vdwg.mxu0
          %v770 = vmul.f32 %v731, 0.25
          %v771 = vmul.f32 %v733, 0.25
          %v772 = vmul.f32 %v736, 0.25
          %v773 = vmul.f32 %v738, 0.25
          %v774 = vmul.f32 %v741, 0.25
          %v775 = vmul.f32 %v743, 0.25
          %v776 = vmul.f32 %v746, 0.25
          %v777 = vmul.f32 %v748, 0.25
          %v778 = vmul.f32 %v751, 0.25
          %v779 = vmul.f32 %v753, 0.25
          %v780 = vmul.f32 %v756, 0.25
          %v781 = vmul.f32 %v758, 0.25
          %v782 = vmul.f32 %v761, 0.25
          %v783 = vmul.f32 %v763, 0.25
          %v784 = vmul.f32 %v766, 0.25
          %v785 = vmul.f32 %v768, 0.25
          %v786 = vadd.f32 %v770, 1.0
          %v787 = vadd.f32 %v771, 1.0
          %v788 = vadd.f32 %v772, 1.0
          %v789 = vadd.f32 %v773, 1.0
          %v790 = vadd.f32 %v774, 1.0
          %v791 = vadd.f32 %v775, 1.0
          %v792 = vadd.f32 %v776, 1.0
          %v793 = vadd.f32 %v777, 1.0
          %v794 = vadd.f32 %v778, 1.0
          %v795 = vadd.f32 %v779, 1.0
          %v796 = vadd.f32 %v780, 1.0
          %v797 = vadd.f32 %v781, 1.0
          %v798 = vadd.f32 %v782, 1.0
          %v799 = vadd.f32 %v783, 1.0
          %v800 = vadd.f32 %v784, 1.0
          %v801 = vadd.f32 %v785, 1.0
          %v802 = vsel %vm334, %v786, %v770
          %v803 = vsel %vm335, %v787, %v771
          %v804 = vsel %vm336, %v788, %v772
          %v805 = vsel %vm337, %v789, %v773
          %v806 = vsel %vm338, %v790, %v774
          %v807 = vsel %vm339, %v791, %v775
          %v808 = vsel %vm340, %v792, %v776
          %v809 = vsel %vm341, %v793, %v777
          %v810 = vsel %vm342, %v794, %v778
          %v811 = vsel %vm343, %v795, %v779
          %v812 = vsel %vm344, %v796, %v780
          %v813 = vsel %vm345, %v797, %v781
          %v814 = vsel %vm346, %v798, %v782
          %v815 = vsel %vm347, %v799, %v783
          %v816 = vsel %vm348, %v800, %v784
          %v817 = vsel %vm349, %v801, %v785
          %v818 = vpack.c.bf16 %v803, %v802
          %v819 = vpack.c.bf16 %v805, %v804
          %v820 = vpack.c.bf16 %v807, %v806
          %v821 = vpack.c.bf16 %v809, %v808
          %v822 = vpack.c.bf16 %v811, %v810
          %v823 = vpack.c.bf16 %v813, %v812
          %v824 = vpack.c.bf16 %v815, %v814
          %v825 = vpack.c.bf16 %v817, %v816
          %826 = vmatpush.bf16.msra.mxu0 %v825
          %827 = vmatpush.bf16.msra.mxu0 %v824
          %828 = vmatpush.bf16.msra.mxu0 %v823
          %829 = vmatpush.bf16.msra.mxu0 %v822
          %830 = vmatpush.bf16.msra.mxu0 %v821
          %831 = vmatpush.bf16.msra.mxu0 %v820
          %832 = vmatpush.bf16.msra.mxu0 %v819
          %833 = vmatpush.bf16.msra.mxu0 %v818
          %834 = vmatmul.bf16.gmra.mxu0 %v307
          %v835 = vpop.f32.mrf.mxu0
          %v836 = vadd.f32 0.0, %v835
          %v837 = vpop.f32.mrf.mxu0
          %v838 = vadd.f32 0.0, %v837
          %839 = vmatmul.bf16.gmra.mxu0 %v308
          %v840 = vpop.f32.mrf.mxu0
          %v841 = vadd.f32 0.0, %v840
          %v842 = vpop.f32.mrf.mxu0
          %v843 = vadd.f32 0.0, %v842
          %844 = vmatmul.bf16.gmra.mxu0 %v309
          %v845 = vpop.f32.mrf.mxu0
          %v846 = vadd.f32 0.0, %v845
          %v847 = vpop.f32.mrf.mxu0
          %v848 = vadd.f32 0.0, %v847
          %849 = vmatmul.bf16.gmra.mxu0 %v310
          %v850 = vpop.f32.mrf.mxu0
          %v851 = vadd.f32 0.0, %v850
          %v852 = vpop.f32.mrf.mxu0
          %v853 = vadd.f32 0.0, %v852
          %854 = vmatmul.bf16.gmra.mxu0 %v311
          %v855 = vpop.f32.mrf.mxu0
          %v856 = vadd.f32 0.0, %v855
          %v857 = vpop.f32.mrf.mxu0
          %v858 = vadd.f32 0.0, %v857
          %859 = vmatmul.bf16.gmra.mxu0 %v312
          %v860 = vpop.f32.mrf.mxu0
          %v861 = vadd.f32 0.0, %v860
          %v862 = vpop.f32.mrf.mxu0
          %v863 = vadd.f32 0.0, %v862
          %864 = vmatmul.bf16.gmra.mxu0 %v313
          %v865 = vpop.f32.mrf.mxu0
          %v866 = vadd.f32 0.0, %v865
          %v867 = vpop.f32.mrf.mxu0
          %v868 = vadd.f32 0.0, %v867
          %869 = vmatmul.bf16.gmra.mxu0 %v314
          %v870 = vpop.f32.mrf.mxu0
          %v871 = vadd.f32 0.0, %v870
          %v872 = vpop.f32.mrf.mxu0
          %v873 = vadd.f32 0.0, %v872
          %874 = vdwg.mxu0
          %v875 = vmul.f32 %v836, 0.33333334
          %v876 = vmul.f32 %v838, 0.33333334
          %v877 = vmul.f32 %v841, 0.33333334
          %v878 = vmul.f32 %v843, 0.33333334
          %v879 = vmul.f32 %v846, 0.33333334
          %v880 = vmul.f32 %v848, 0.33333334
          %v881 = vmul.f32 %v851, 0.33333334
          %v882 = vmul.f32 %v853, 0.33333334
          %v883 = vmul.f32 %v856, 0.33333334
          %v884 = vmul.f32 %v858, 0.33333334
          %v885 = vmul.f32 %v861, 0.33333334
          %v886 = vmul.f32 %v863, 0.33333334
          %v887 = vmul.f32 %v866, 0.33333334
          %v888 = vmul.f32 %v868, 0.33333334
          %v889 = vmul.f32 %v871, 0.33333334
          %v890 = vmul.f32 %v873, 0.33333334
          %v891 = vadd.f32 %v875, 1.0
          %v892 = vadd.f32 %v876, 1.0
          %v893 = vadd.f32 %v877, 1.0
          %v894 = vadd.f32 %v878, 1.0
          %v895 = vadd.f32 %v879, 1.0
          %v896 = vadd.f32 %v880, 1.0
          %v897 = vadd.f32 %v881, 1.0
          %v898 = vadd.f32 %v882, 1.0
          %v899 = vadd.f32 %v883, 1.0
          %v900 = vadd.f32 %v884, 1.0
          %v901 = vadd.f32 %v885, 1.0
          %v902 = vadd.f32 %v886, 1.0
          %v903 = vadd.f32 %v887, 1.0
          %v904 = vadd.f32 %v888, 1.0
          %v905 = vadd.f32 %v889, 1.0
          %v906 = vadd.f32 %v890, 1.0
          %v907 = vsel %vm334, %v891, %v875
          %v908 = vsel %vm335, %v892, %v876
          %v909 = vsel %vm336, %v893, %v877
          %v910 = vsel %vm337, %v894, %v878
          %v911 = vsel %vm338, %v895, %v879
          %v912 = vsel %vm339, %v896, %v880
          %v913 = vsel %vm340, %v897, %v881
          %v914 = vsel %vm341, %v898, %v882
          %v915 = vsel %vm342, %v899, %v883
          %v916 = vsel %vm343, %v900, %v884
          %v917 = vsel %vm344, %v901, %v885
          %v918 = vsel %vm345, %v902, %v886
          %v919 = vsel %vm346, %v903, %v887
          %v920 = vsel %vm347, %v904, %v888
          %v921 = vsel %vm348, %v905, %v889
          %v922 = vsel %vm349, %v906, %v890
          %v923 = vpack.c.bf16 %v908, %v907
          %v924 = vpack.c.bf16 %v910, %v909
          %v925 = vpack.c.bf16 %v912, %v911
          %v926 = vpack.c.bf16 %v914, %v913
          %v927 = vpack.c.bf16 %v916, %v915
          %v928 = vpack.c.bf16 %v918, %v917
          %v929 = vpack.c.bf16 %v920, %v919
          %v930 = vpack.c.bf16 %v922, %v921
          %931 = vmatpush.bf16.msra.mxu0 %v930
          %932 = vmatpush.bf16.msra.mxu0 %v929
          %933 = vmatpush.bf16.msra.mxu0 %v928
          %934 = vmatpush.bf16.msra.mxu0 %v927
          %935 = vmatpush.bf16.msra.mxu0 %v926
          %936 = vmatpush.bf16.msra.mxu0 %v925
          %937 = vmatpush.bf16.msra.mxu0 %v924
          %938 = vmatpush.bf16.msra.mxu0 %v923
          %939 = vmatmul.bf16.gmra.mxu0 %v307
          %v940 = vpop.f32.mrf.mxu0
          %v941 = vadd.f32 0.0, %v940
          %v942 = vpop.f32.mrf.mxu0
          %v943 = vadd.f32 0.0, %v942
          %944 = vmatmul.bf16.gmra.mxu0 %v308
          %v945 = vpop.f32.mrf.mxu0
          %v946 = vadd.f32 0.0, %v945
          %v947 = vpop.f32.mrf.mxu0
          %v948 = vadd.f32 0.0, %v947
          %949 = vmatmul.bf16.gmra.mxu0 %v309
          %v950 = vpop.f32.mrf.mxu0
          %v951 = vadd.f32 0.0, %v950
          %v952 = vpop.f32.mrf.mxu0
          %v953 = vadd.f32 0.0, %v952
          %954 = vmatmul.bf16.gmra.mxu0 %v310
          %v955 = vpop.f32.mrf.mxu0
          %v956 = vadd.f32 0.0, %v955
          %v957 = vpop.f32.mrf.mxu0
          %v958 = vadd.f32 0.0, %v957
          %959 = vmatmul.bf16.gmra.mxu0 %v311
          %v960 = vpop.f32.mrf.mxu0
          %v961 = vadd.f32 0.0, %v960
          %v962 = vpop.f32.mrf.mxu0
          %v963 = vadd.f32 0.0, %v962
          %964 = vmatmul.bf16.gmra.mxu0 %v312
          %v965 = vpop.f32.mrf.mxu0
          %v966 = vadd.f32 0.0, %v965
          %v967 = vpop.f32.mrf.mxu0
          %v968 = vadd.f32 0.0, %v967
          %969 = vmatmul.bf16.gmra.mxu0 %v313
          %v970 = vpop.f32.mrf.mxu0
          %v971 = vadd.f32 0.0, %v970
          %v972 = vpop.f32.mrf.mxu0
          %v973 = vadd.f32 0.0, %v972
          %974 = vmatmul.bf16.gmra.mxu0 %v314
          %v975 = vpop.f32.mrf.mxu0
          %v976 = vadd.f32 0.0, %v975
          %v977 = vpop.f32.mrf.mxu0
          %v978 = vadd.f32 0.0, %v977
          %979 = vdwg.mxu0
          %v980 = vmul.f32 %v941, 0.5
          %v981 = vmul.f32 %v943, 0.5
          %v982 = vmul.f32 %v946, 0.5
          %v983 = vmul.f32 %v948, 0.5
          %v984 = vmul.f32 %v951, 0.5
          %v985 = vmul.f32 %v953, 0.5
          %v986 = vmul.f32 %v956, 0.5
          %v987 = vmul.f32 %v958, 0.5
          %v988 = vmul.f32 %v961, 0.5
          %v989 = vmul.f32 %v963, 0.5
          %v990 = vmul.f32 %v966, 0.5
          %v991 = vmul.f32 %v968, 0.5
          %v992 = vmul.f32 %v971, 0.5
          %v993 = vmul.f32 %v973, 0.5
          %v994 = vmul.f32 %v976, 0.5
          %v995 = vmul.f32 %v978, 0.5
          %v996 = vadd.f32 %v980, 1.0
          %v997 = vadd.f32 %v981, 1.0
          %v998 = vadd.f32 %v982, 1.0
          %v999 = vadd.f32 %v983, 1.0
          %v1000 = vadd.f32 %v984, 1.0
          %v1001 = vadd.f32 %v985, 1.0
          %v1002 = vadd.f32 %v986, 1.0
          %v1003 = vadd.f32 %v987, 1.0
          %v1004 = vadd.f32 %v988, 1.0
          %v1005 = vadd.f32 %v989, 1.0
          %v1006 = vadd.f32 %v990, 1.0
          %v1007 = vadd.f32 %v991, 1.0
          %v1008 = vadd.f32 %v992, 1.0
          %v1009 = vadd.f32 %v993, 1.0
          %v1010 = vadd.f32 %v994, 1.0
          %v1011 = vadd.f32 %v995, 1.0
          %v1012 = vsel %vm334, %v996, %v980
          %v1013 = vsel %vm335, %v997, %v981
          %v1014 = vsel %vm336, %v998, %v982
          %v1015 = vsel %vm337, %v999, %v983
          %v1016 = vsel %vm338, %v1000, %v984
          %v1017 = vsel %vm339, %v1001, %v985
          %v1018 = vsel %vm340, %v1002, %v986
          %v1019 = vsel %vm341, %v1003, %v987
          %v1020 = vsel %vm342, %v1004, %v988
          %v1021 = vsel %vm343, %v1005, %v989
          %v1022 = vsel %vm344, %v1006, %v990
          %v1023 = vsel %vm345, %v1007, %v991
          %v1024 = vsel %vm346, %v1008, %v992
          %v1025 = vsel %vm347, %v1009, %v993
          %v1026 = vsel %vm348, %v1010, %v994
          %v1027 = vsel %vm349, %v1011, %v995
          %v1028 = vpack.c.bf16 %v1013, %v1012
          %v1029 = vpack.c.bf16 %v1015, %v1014
          %v1030 = vpack.c.bf16 %v1017, %v1016
          %v1031 = vpack.c.bf16 %v1019, %v1018
          %v1032 = vpack.c.bf16 %v1021, %v1020
          %v1033 = vpack.c.bf16 %v1023, %v1022
          %v1034 = vpack.c.bf16 %v1025, %v1024
          %v1035 = vpack.c.bf16 %v1027, %v1026
          %1036 = vmatpush.bf16.msra.mxu0 %v1035
          %1037 = vmatpush.bf16.msra.mxu0 %v1034
          %1038 = vmatpush.bf16.msra.mxu0 %v1033
          %1039 = vmatpush.bf16.msra.mxu0 %v1032
          %1040 = vmatpush.bf16.msra.mxu0 %v1031
          %1041 = vmatpush.bf16.msra.mxu0 %v1030
          %1042 = vmatpush.bf16.msra.mxu0 %v1029
          %1043 = vmatpush.bf16.msra.mxu0 %v1028
          %1044 = vmatmul.bf16.gmra.mxu0 %v307
          %v1045 = vpop.f32.mrf.mxu0
          %v1046 = vadd.f32 0.0, %v1045
          %v1047 = vpop.f32.mrf.mxu0
          %v1048 = vadd.f32 0.0, %v1047
          %1049 = vmatmul.bf16.gmra.mxu0 %v308
          %v1050 = vpop.f32.mrf.mxu0
          %v1051 = vadd.f32 0.0, %v1050
          %v1052 = vpop.f32.mrf.mxu0
          %v1053 = vadd.f32 0.0, %v1052
          %1054 = vmatmul.bf16.gmra.mxu0 %v309
          %v1055 = vpop.f32.mrf.mxu0
          %v1056 = vadd.f32 0.0, %v1055
          %v1057 = vpop.f32.mrf.mxu0
          %v1058 = vadd.f32 0.0, %v1057
          %1059 = vmatmul.bf16.gmra.mxu0 %v310
          %v1060 = vpop.f32.mrf.mxu0
          %v1061 = vadd.f32 0.0, %v1060
          %v1062 = vpop.f32.mrf.mxu0
          %v1063 = vadd.f32 0.0, %v1062
          %1064 = vmatmul.bf16.gmra.mxu0 %v311
          %v1065 = vpop.f32.mrf.mxu0
          %v1066 = vadd.f32 0.0, %v1065
          %v1067 = vpop.f32.mrf.mxu0
          %v1068 = vadd.f32 0.0, %v1067
          %1069 = vmatmul.bf16.gmra.mxu0 %v312
          %v1070 = vpop.f32.mrf.mxu0
          %v1071 = vadd.f32 0.0, %v1070
          %v1072 = vpop.f32.mrf.mxu0
          %v1073 = vadd.f32 0.0, %v1072
          %1074 = vmatmul.bf16.gmra.mxu0 %v313
          %v1075 = vpop.f32.mrf.mxu0
          %v1076 = vadd.f32 0.0, %v1075
          %v1077 = vpop.f32.mrf.mxu0
          %v1078 = vadd.f32 0.0, %v1077
          %1079 = vmatmul.bf16.gmra.mxu0 %v314
          %v1080 = vpop.f32.mrf.mxu0
          %v1081 = vadd.f32 0.0, %v1080
          %v1082 = vpop.f32.mrf.mxu0
          %v1083 = vadd.f32 0.0, %v1082
          %1084 = vdwg.mxu0
          %1085 = vst [vmem:[#allocation9] sm:$0xff] %v1046
          %1086 = vst [vmem:[#allocation9 + $0x8] sm:$0xff] %v1048
          %1087 = vst [vmem:[#allocation9 + $0x10] sm:$0xff] %v1051
          %1088 = vst [vmem:[#allocation9 + $0x18] sm:$0xff] %v1053
          %1089 = vst [vmem:[#allocation9 + $0x20] sm:$0xff] %v1056
          %1090 = vst [vmem:[#allocation9 + $0x28] sm:$0xff] %v1058
          %1091 = vst [vmem:[#allocation9 + $0x30] sm:$0xff] %v1061
          %1092 = vst [vmem:[#allocation9 + $0x38] sm:$0xff] %v1063
          %1093 = vst [vmem:[#allocation9 + $0x40] sm:$0xff] %v1066
          %1094 = vst [vmem:[#allocation9 + $0x48] sm:$0xff] %v1068
          %1095 = vst [vmem:[#allocation9 + $0x50] sm:$0xff] %v1071
          %1096 = vst [vmem:[#allocation9 + $0x58] sm:$0xff] %v1073
          %1097 = vst [vmem:[#allocation9 + $0x60] sm:$0xff] %v1076
          %1098 = vst [vmem:[#allocation9 + $0x68] sm:$0xff] %v1078
          %1099 = vst [vmem:[#allocation9 + $0x70] sm:$0xff] %v1081
          %1100 = vst [vmem:[#allocation9 + $0x78] sm:$0xff] %v1083
          %v1101 = vld [vmem:[%s0] sm:$0xff]
          %1102 = vset.pattern.permute.xlu0 0
          %1103 = vperm.xlu0 %1102, %v1101
          %v1104 = vpop.permute.xlu0 %1103
          %vm1105 = vcmp.eq.s32.totalorder %v333, %v1104
          %v1106 = vsel %vm1105, 1, 0
          %v1107 = vcvt.s32.f32 %v1106
          %1108 = vmatpush.msra.mxu0 %v1083
          %1109 = vmatpush.msra.mxu0 %v1081
          %1110 = vmatpush.msra.mxu0 %v1078
          %1111 = vmatpush.msra.mxu0 %v1076
          %1112 = vmatpush.msra.mxu0 %v1073
          %1113 = vmatpush.msra.mxu0 %v1071
          %1114 = vmatpush.msra.mxu0 %v1068
          %1115 = vmatpush.msra.mxu0 %v1066
          %1116 = vmatpush.msra.mxu0 %v1063
          %1117 = vmatpush.msra.mxu0 %v1061
          %1118 = vmatpush.msra.mxu0 %v1058
          %1119 = vmatpush.msra.mxu0 %v1056
          %1120 = vmatpush.msra.mxu0 %v1053
          %1121 = vmatpush.msra.mxu0 %v1051
          %1122 = vmatpush.msra.mxu0 %v1048
          %1123 = vmatpush.msra.mxu0 %v1046
          %1124 = vmatmul.f32.gmra.mxu0 %v1107
          %v1125 = vpop.f32.mrf.mxu0
          %v1126 = vadd.f32 0.0, %v1125
          %1127 = vdwg.mxu0
          %vm1128 = vcmp.lt.s32.totalorder %v333, 16
          %vm1129 = vcmp.lt.s32.totalorder %v316, 4
          %vm1130 = vmand %vm1128, %vm1129
          %v1131 = vld [vmem:[%s3] sm:$0xff]
          %v1132 = vsel %vm1130, %v1131, -1e+30
          %v1133 = vsel %vm1130, %v1126, -1e+30
          %1134 = vmax.xlane.f32.xlu0 %v1132
          %v1135 = vpop.xlane.xlu0 %1134
          %v1136 = vsub.f32 %v1132, %v1135
          %v1137 = vmul.f32 %v1136, 1.442695
          %v1138 = vpow.pop %v1137
          %1139 = vadd.xlane.f32.xlu0 %v1138
          %v1140 = vpop.xlane.xlu0 %1139
          %v1141 = vrcp.pop %v1140
          %v1142 = vmul.f32 %v1140, %v1141
          %v1143 = vsub.f32 1.0, %v1142
          %v1144 = vmul.f32 %v1141, %v1143
          %v1145 = vadd.f32 %v1141, %v1144
          %vm1146 = vweird.f32 %v1140
          %vm1147 = vweird.f32 %v1141
          %vm1148 = vmor %vm1146, %vm1147
          %v1149 = vsel %vm1148, %v1141, %v1145
          %v1150 = vand.u32 2147483647, %v1140
          %vm1151 = vcmp.eq.f32.partialorder %v1150, 8.507059e+37
          %v1152 = vand.u32 %v1140, 2147483648
          %v1153 = vor.u32 1.1754944e-38, %v1152
          %v1154 = vsel %vm1151, %v1153, %v1149
          %v1155 = vmul.f32 %v1138, %v1154
          %1156 = vmax.xlane.f32.xlu0 %v1133
          %v1157 = vpop.xlane.xlu0 %1156
          %v1158 = vsub.f32 %v1133, %v1157
          %v1159 = vmul.f32 %v1158, 1.442695
          %v1160 = vpow.pop %v1159
          %1161 = vadd.xlane.f32.xlu0 %v1160
          %v1162 = vpop.xlane.xlu0 %1161
          %v1163 = vlog2.pop %v1162
          %v1164 = vmul.f32 %v1163, 0.6931472
          %v1165 = vsub.f32 %v1158, %v1164
          %v1166 = vmul.f32 %v1155, %v1165
          %v1167 = vsel %vm1130, %v1166, 0.0
          %1168 = vadd.xlane.f32.xlu0 %v1167
          %v1169 = vpop.xlane.xlu0 %1168
          %v1170 = vrot.slane %v1169, 4
          %v1171 = vadd.f32 %v1169, %v1170
          %v1172 = vrot.slane %v1171, 2
          %v1173 = vadd.f32 %v1171, %v1172
          %v1174 = vrot.slane %v1173, 1
          %v1175 = vadd.f32 %v1173, %v1174
          %s1176 = vtos %v1175
          %s1177 = ssub.f32 0.0, %s1176
          %s1178 = smul.f32 %s1177, 0.25
          %s1179 = scalar_lea.smem [#allocation10], 0
          %1180 = sst [smem:[%s1179]] %s1178
        $region52: #{tpu_custom_call.1} parent=35 // pred_fallthru
          _
        // Predicated region
        $region53: #{tpu_custom_call.1} parent=35 // pred_check
          %p1181 = pneg %p125
        $region54: #{tpu_custom_call.1} parent=35 // pred_check_branch
          %1183 = sbr.rel (%p1181) target = $region56
        $region55: #{tpu_custom_call.1} parent=35 // pred_region
          %1185 = vsyncadd [#allocation5], 0
          %s1186 = sshll.u32 [#allocation9], 4
          %s1187 = int_to_ptr.vmem [resolvable:$true] %s1186
          %s1188 = sshll.u32 %s4, 4
          %s1189 = int_to_ptr.hbm [resolvable:$true] %s1188
          %1194 = dma.vmem_to_hbm [thread:$0]  %s1187, 2048, %s1189, [#allocation5], 128, 128, 8
        $region56: #{tpu_custom_call.1} parent=35 // pred_fallthru
          _
        // Predicated region
        $region57: #{tpu_custom_call.1} parent=35 // pred_check
          %p1195 = pneg %p146
        $region58: #{tpu_custom_call.1} parent=35 // pred_check_branch
          %1197 = sbr.rel (%p1195) target = $region60
        $region59: #{tpu_custom_call.1} parent=35 // pred_region
          %1199 = vsyncadd [#allocation6], 0
          %s1201 = sshll.u32 %s5, 4
          %s1202 = int_to_ptr.hbm [resolvable:$true] %s1201
          %1204 = dma.smem_to_hbm [#allocation10], 16, %s1202, [#allocation6]
        $region60: #{tpu_custom_call.1} parent=35 // pred_fallthru
          _
        // Predicated region
        $region61: #{tpu_custom_call.1} parent=35 // pred_check
          %p1205 = pneg %p125
        $region62: #{tpu_custom_call.1} parent=35 // pred_check_branch
          %1207 = sbr.rel (%p1205) target = $region64
        $region63: #{tpu_custom_call.1} parent=35 // pred_region
          %1209 = dma.done [#allocation5], 2048
        $region64: #{tpu_custom_call.1} parent=35 // pred_fallthru
          _
        // Predicated region
        $region65: #{tpu_custom_call.1} parent=35 // pred_check
          %p1210 = pneg %p146
        $region66: #{tpu_custom_call.1} parent=35 // pred_check_branch
          %1212 = sbr.rel (%p1210) target = $region68
        $region67: #{tpu_custom_call.1} parent=35 // pred_region
          %1214 = dma.done [#allocation6], 16
        $region68: #{tpu_custom_call.1} parent=35 // pred_fallthru
          _
        %1215 = sfence
      $region36: #{tpu_custom_call.1} parent=5 // pred_fallthru
        _
      %p1216 = scmp.le.s32.totalorder 2, %s18
      // Predicated region
      $region69: #{tpu_custom_call.1} parent=5 // pred_check
        %p1217 = pneg %p1216
      $region70: #{tpu_custom_call.1} parent=5 // pred_check_branch
        %1219 = sbr.rel (%p1217) target = $region72
      $region71: #{tpu_custom_call.1} parent=5 // pred_region
        %s1220 = ssub.s32 %s18, 2
      $region72: #{tpu_custom_call.1} parent=5 // pred_fallthru
        _
    $region6: #{tpu_custom_call.1} parent=1 // loop_footer
      %s22 = sadd.s32 1, %s18
    $region7: #{tpu_custom_call.1} parent=1 // loop_footer_branch
      %17 = sbr.rel target = $region3
    $region8: #{tpu_custom_call.1} parent=1 // loop_exit
      _
    %1221 = vsyncpa [#allocation4], 1
    %s1222 = scalar_lea.sflag [#allocation4], 1
    %1223 = vsyncpa %s1222, 1
    %1224 = vsyncpa [#allocation5], 1
    %s1225 = scalar_lea.sflag [#allocation5], 1
    %1226 = vsyncpa %s1225, 1
    %1227 = vsyncpa [#allocation6], 1
    %s1228 = scalar_lea.sflag [#allocation6], 1
    %1229 = vsyncpa %s1228, 1
    %1230 = vsyncpa [#allocation7], 1
    %s1231 = scalar_lea.sflag [#allocation7], 1
    %1232 = vsyncpa %s1231, 1

</llo_original>
